<compile_context>
chip_gen: v7x
topology: tpu7x:2x2x1
jax: 0.10.0
libtpu: 0.0.40
codegen_flags: <defaults>
</compile_context>

<pallas_src>
import functools

import jax
import jax.numpy as jnp
import numpy as np
from jax.experimental import pallas as pl
from jax.experimental.pallas import tpu as pltpu


def ftlstm_kernel(x_ref, *rest, num_layers, hidden):
    """Fused multi-layer LSTM forward, full sequence, time-major, single TensorCore.

    x_ref:   (T, B, D_in) time-major input (float32).
    rest:    per layer l: wih_ref (D_l, 4H) bf16, whh_ref (H, 4H) bf16, bias_ref (1, 4H) f32,
             with gate columns pre-permuted to [i, f, o, g]; followed by out_ref (T, B, H) f32.
    """
    w_refs = rest[:-1]
    out_ref = rest[-1]
    T, B, d_in = x_ref.shape
    H = hidden

    def cell(gates, c):
        # gates: (B, 4H) f32, gate columns ordered [i, f, o, g].
        ifo = jax.nn.sigmoid(gates[:, :3 * H])          # one EUP slab for i, f, o
        g_g = jnp.tanh(gates[:, 3 * H:])                # one EUP slab for g
        c_new = ifo[:, H:2 * H] * c + ifo[:, :H] * g_g  # f*c + i*g
        h_new = ifo[:, 2 * H:] * jnp.tanh(c_new)        # o*tanh(c')
        return h_new, c_new

    hs = None  # previous layer's per-step hidden states (traced values)
    for layer in range(num_layers):
        wih = w_refs[3 * layer][...]        # (D_l, 4H) bf16
        whh = w_refs[3 * layer + 1][...]    # (H,  4H) bf16
        bias = w_refs[3 * layer + 2][...]   # (1,  4H) f32
        mxu_dtype = whh.dtype

        if layer == 0:
            # Hoisted input projection for the first layer: one (T*B, D) x (D, 4H) matmul
            # plus a single bias add, kept time-major so pre0[t] is a contiguous (B, 4H) slab.
            x2d = x_ref[...].reshape(T * B, d_in).astype(mxu_dtype)
            pre0 = jnp.dot(x2d, wih, preferred_element_type=jnp.float32) + bias
            pre0 = pre0.reshape(T, B, 4 * H)

        prev = hs
        hs = []
        h = jnp.zeros((B, H), jnp.float32)
        c = jnp.zeros((B, H), jnp.float32)
        # Fully-unrolled recurrence (T is small/static); only h @ W_hh^T + gate math is on
        # the serial path.  For layer > 0 the input projection depends only on the previous
        # layer's step-t output, forming a (layer, time) wavefront in the dataflow graph.
        for t in range(T):
            if layer == 0:
                x_side = pre0[t]
            else:
                x_side = jnp.dot(prev[t].astype(mxu_dtype), wih,
                                 preferred_element_type=jnp.float32) + bias
            gates = x_side + jnp.dot(h.astype(mxu_dtype), whh,
                                     preferred_element_type=jnp.float32)
            h, c = cell(gates, c)
            hs.append(h)

    # Single full-slab store of the last layer only (no per-step masked stores).
    out_ref[...] = jnp.stack(hs, axis=0).astype(out_ref.dtype)


def _permute_gates_ifog(w_cols):
    """Permute last-dim gate blocks from PyTorch order [i, f, g, o] to [i, f, o, g]."""
    H = w_cols.shape[-1] // 4
    return jnp.concatenate(
        [w_cols[..., :2 * H], w_cols[..., 3 * H:], w_cols[..., 2 * H:3 * H]], axis=-1)


def make_ftlstm_params(key, input_dim, hidden_dim, num_layers, compute_dtype=jnp.bfloat16):
    """PyTorch-style LSTM init (U(-1/sqrt(H), 1/sqrt(H))).

    Returns (raw, prepared):
      raw:      per layer (w_ih (4H, D_l), w_hh (4H, H), b_ih (4H,), b_hh (4H,)) in f32,
                PyTorch gate order [i, f, g, o] — used by the f32 semantic reference.
      prepared: per layer (W_ih^T, W_hh^T in compute_dtype, combined bias f32), with gate
                columns permuted to [i, f, o, g] — consumed by the kernel.
    All preparation happens once, outside the jitted forward."""
    bound = 1.0 / np.sqrt(hidden_dim)
    raw, prepared = [], []
    for layer in range(num_layers):
        in_dim = input_dim if layer == 0 else hidden_dim
        key, k1, k2, k3, k4 = jax.random.split(key, 5)
        w_ih = jax.random.uniform(k1, (4 * hidden_dim, in_dim), jnp.float32, -bound, bound)
        w_hh = jax.random.uniform(k2, (4 * hidden_dim, hidden_dim), jnp.float32, -bound, bound)
        b_ih = jax.random.uniform(k3, (4 * hidden_dim,), jnp.float32, -bound, bound)
        b_hh = jax.random.uniform(k4, (4 * hidden_dim,), jnp.float32, -bound, bound)
        raw.append((w_ih, w_hh, b_ih, b_hh))
        prepared.append((
            _permute_gates_ifog(jnp.asarray(w_ih.T, compute_dtype)),           # (D_l, 4H)
            _permute_gates_ifog(jnp.asarray(w_hh.T, compute_dtype)),           # (H, 4H)
            _permute_gates_ifog((b_ih + b_hh)[None, :]).astype(jnp.float32),   # (1, 4H)
        ))
    return tuple(raw), tuple(prepared)


@jax.jit
def ftlstm_forward(inputx, params):
    """FTLSTM.forward: inputx (B, T, D_in) batch-first -> out (B, T, H) batch-first."""
    B, T, _ = inputx.shape
    num_layers = len(params)
    H = params[0][1].shape[0]

    flat_weights = []
    for (wih_t, whh_t, bias_row) in params:
        flat_weights.extend([wih_t, whh_t, bias_row])

    # Layout plumbing only: the kernel works time-major internally.
    x_tm = jnp.transpose(inputx, (1, 0, 2))  # (T, B, D_in)

    vmem = pl.BlockSpec(memory_space=pltpu.MemorySpace.VMEM)
    kernel = functools.partial(ftlstm_kernel, num_layers=num_layers, hidden=H)
    out_tm = pl.pallas_call(
        kernel,
        out_shape=jax.ShapeDtypeStruct((T, B, H), jnp.float32),
        in_specs=[vmem] * (1 + len(flat_weights)),
        out_specs=vmem,
    )(x_tm, *flat_weights)
    return jnp.transpose(out_tm, (1, 0, 2))  # back to batch-first (B, T, H)


def ftlstm_reference_mirror(inputx, params):
    """Pure-JAX mirror of the kernel math (same bf16 operands, gate permutation, f32 acc)."""
    x = inputx
    B, T, _ = x.shape
    for (wih, whh, bias) in params:
        H = whh.shape[0]
        h = jnp.zeros((B, H), jnp.float32)
        c = jnp.zeros((B, H), jnp.float32)
        hs = []
        for t in range(T):
            gates = (jnp.dot(x[:, t, :].astype(wih.dtype), wih,
                             preferred_element_type=jnp.float32) + bias
                     + jnp.dot(h.astype(whh.dtype), whh,
                               preferred_element_type=jnp.float32))
            ifo = jax.nn.sigmoid(gates[:, :3 * H])
            g_g = jnp.tanh(gates[:, 3 * H:])
            c = ifo[:, H:2 * H] * c + ifo[:, :H] * g_g
            h = ifo[:, 2 * H:] * jnp.tanh(c)
            hs.append(h)
        x = jnp.stack(hs, axis=1)
    return x


def ftlstm_reference_f32(inputx, raw_params):
    """Full-precision reference in PyTorch gate order [i, f, g, o] (semantic ground truth)."""
    x = inputx
    B, T, _ = x.shape
    for (w_ih, w_hh, b_ih, b_hh) in raw_params:
        H = w_hh.shape[1]
        h = jnp.zeros((B, H), jnp.float32)
        c = jnp.zeros((B, H), jnp.float32)
        hs = []
        for t in range(T):
            gates = x[:, t, :] @ w_ih.T + h @ w_hh.T + b_ih + b_hh
            i_g = jax.nn.sigmoid(gates[:, 0 * H:1 * H])
            f_g = jax.nn.sigmoid(gates[:, 1 * H:2 * H])
            g_g = jnp.tanh(gates[:, 2 * H:3 * H])
            o_g = jax.nn.sigmoid(gates[:, 3 * H:4 * H])
            c = f_g * c + i_g * g_g
            h = o_g * jnp.tanh(c)
            hs.append(h)
        x = jnp.stack(hs, axis=1)
    return x


if __name__ == "__main__":
    # Small shapes consistent with the module: batch=2, seq=8, inputx_dim=4,
    # hidden_dim=32, num_layers_ftlstm=2.
    B, T, D_IN, HIDDEN, NUM_LAYERS = 2, 8, 4, 32, 2

    key = jax.random.PRNGKey(0)
    key, pkey, xkey = jax.random.split(key, 3)
    raw_params, params = make_ftlstm_params(pkey, D_IN, HIDDEN, NUM_LAYERS)
    inputx = jax.random.normal(xkey, (B, T, D_IN), dtype=jnp.float32)

    out = jax.block_until_ready(ftlstm_forward(inputx, params))
    assert out.shape == (B, T, HIDDEN), out.shape
    assert bool(jnp.all(jnp.isfinite(out)))

    mirror = jax.block_until_ready(ftlstm_reference_mirror(inputx, params))
    assert float(jnp.max(jnp.abs(out - mirror))) < 2e-2

    ref32 = jax.block_until_ready(ftlstm_reference_f32(inputx, raw_params))
    assert float(jnp.max(jnp.abs(out - ref32))) < 5e-2

    print("KERNEL_OK")
</pallas_src>

<mosaic_0001>
module attributes {stable_mosaic.version = 11 : i64} {
  func.func @ftlstm_kernel(%arg0: memref<8x2x4xf32, #tpu.memory_space<vmem>>, %arg1: memref<4x128xbf16, #tpu.memory_space<vmem>>, %arg2: memref<32x128xbf16, #tpu.memory_space<vmem>>, %arg3: memref<1x128xf32, #tpu.memory_space<vmem>>, %arg4: memref<32x128xbf16, #tpu.memory_space<vmem>>, %arg5: memref<32x128xbf16, #tpu.memory_space<vmem>>, %arg6: memref<1x128xf32, #tpu.memory_space<vmem>>, %arg7: memref<8x2x32xf32, #tpu.memory_space<vmem>>) attributes {dimension_semantics = [], scalar_prefetch = 0 : i64, scratch_operands = 0 : i64, tpu.core_type = #tpu.core_type<tc>} {
    %c0 = arith.constant 0 : index
    %c0_0 = arith.constant 0 : index
    %0 = vector.load %arg1[%c0, %c0_0] : memref<4x128xbf16, #tpu.memory_space<vmem>>, vector<4x128xbf16>
    %c0_1 = arith.constant 0 : index
    %c0_2 = arith.constant 0 : index
    %1 = vector.load %arg2[%c0_1, %c0_2] : memref<32x128xbf16, #tpu.memory_space<vmem>>, vector<32x128xbf16>
    %c0_3 = arith.constant 0 : index
    %c0_4 = arith.constant 0 : index
    %2 = vector.load %arg3[%c0_3, %c0_4] : memref<1x128xf32, #tpu.memory_space<vmem>>, vector<1x128xf32>
    %c0_5 = arith.constant 0 : index
    %c0_6 = arith.constant 0 : index
    %c0_7 = arith.constant 0 : index
    %3 = vector.load %arg0[%c0_5, %c0_6, %c0_7] : memref<8x2x4xf32, #tpu.memory_space<vmem>>, vector<8x2x4xf32>
    %4 = vector.shape_cast %3 : vector<8x2x4xf32> to vector<16x4xf32>
    %5 = arith.truncf %4 : vector<16x4xf32> to vector<16x4xbf16>
    %cst = arith.constant dense<0.000000e+00> : vector<16x128xf32>
    %6 = tpu.matmul %5, %0, %cst {dimension_numbers = #tpu.dot_dimension_numbers<[1], [0], [0], [1], [0, 0, 1, 1], [], []>} : vector<16x4xbf16>, vector<4x128xbf16>, vector<16x128xf32> -> vector<16x128xf32>
    %7 = vector.broadcast %2 : vector<1x128xf32> to vector<16x128xf32>
    %8 = arith.addf %6, %7 : vector<16x128xf32>
    %9 = vector.shape_cast %8 : vector<16x128xf32> to vector<8x2x128xf32>
    %cst_8 = arith.constant 0.000000e+00 : f32
    %10 = vector.broadcast %cst_8 : f32 to vector<2x32xf32>
    %cst_9 = arith.constant 0.000000e+00 : f32
    %11 = vector.broadcast %cst_9 : f32 to vector<2x32xf32>
    %12 = vector.extract_strided_slice %9 {offsets = [0, 0, 0], sizes = [1, 2, 128], strides = [1, 1, 1]} : vector<8x2x128xf32> to vector<1x2x128xf32>
    %13 = vector.shape_cast %12 : vector<1x2x128xf32> to vector<2x128xf32>
    %14 = arith.truncf %10 : vector<2x32xf32> to vector<2x32xbf16>
    %cst_10 = arith.constant dense<0.000000e+00> : vector<2x128xf32>
    %15 = tpu.matmul %14, %1, %cst_10 {dimension_numbers = #tpu.dot_dimension_numbers<[1], [0], [0], [1], [0, 0, 1, 1], [], []>} : vector<2x32xbf16>, vector<32x128xbf16>, vector<2x128xf32> -> vector<2x128xf32>
    %16 = arith.addf %13, %15 : vector<2x128xf32>
    %17 = vector.extract_strided_slice %16 {offsets = [0, 0], sizes = [2, 96], strides = [1, 1]} : vector<2x128xf32> to vector<2x96xf32>
    %18 = arith.negf %17 : vector<2x96xf32>
    %19 = math.exp %18 : vector<2x96xf32>
    %cst_11 = arith.constant 1.000000e+00 : f32
    %20 = vector.broadcast %cst_11 : f32 to vector<2x96xf32>
    %21 = arith.addf %20, %19 : vector<2x96xf32>
    %22 = arith.divf %20, %21 : vector<2x96xf32>
    %23 = vector.extract_strided_slice %16 {offsets = [0, 96], sizes = [2, 32], strides = [1, 1]} : vector<2x128xf32> to vector<2x32xf32>
    %24 = math.tanh %23 : vector<2x32xf32>
    %25 = vector.extract_strided_slice %22 {offsets = [0, 32], sizes = [2, 32], strides = [1, 1]} : vector<2x96xf32> to vector<2x32xf32>
    %26 = arith.mulf %25, %11 : vector<2x32xf32>
    %27 = vector.extract_strided_slice %22 {offsets = [0, 0], sizes = [2, 32], strides = [1, 1]} : vector<2x96xf32> to vector<2x32xf32>
    %28 = arith.mulf %27, %24 : vector<2x32xf32>
    %29 = arith.addf %26, %28 : vector<2x32xf32>
    %30 = vector.extract_strided_slice %22 {offsets = [0, 64], sizes = [2, 32], strides = [1, 1]} : vector<2x96xf32> to vector<2x32xf32>
    %31 = math.tanh %29 : vector<2x32xf32>
    %32 = arith.mulf %30, %31 : vector<2x32xf32>
    %33 = vector.extract_strided_slice %9 {offsets = [1, 0, 0], sizes = [1, 2, 128], strides = [1, 1, 1]} : vector<8x2x128xf32> to vector<1x2x128xf32>
    %34 = vector.shape_cast %33 : vector<1x2x128xf32> to vector<2x128xf32>
    %35 = arith.truncf %32 : vector<2x32xf32> to vector<2x32xbf16>
    %cst_12 = arith.constant dense<0.000000e+00> : vector<2x128xf32>
    %36 = tpu.matmul %35, %1, %cst_12 {dimension_numbers = #tpu.dot_dimension_numbers<[1], [0], [0], [1], [0, 0, 1, 1], [], []>} : vector<2x32xbf16>, vector<32x128xbf16>, vector<2x128xf32> -> vector<2x128xf32>
    %37 = arith.addf %34, %36 : vector<2x128xf32>
    %38 = vector.extract_strided_slice %37 {offsets = [0, 0], sizes = [2, 96], strides = [1, 1]} : vector<2x128xf32> to vector<2x96xf32>
    %39 = arith.negf %38 : vector<2x96xf32>
    %40 = math.exp %39 : vector<2x96xf32>
    %cst_13 = arith.constant 1.000000e+00 : f32
    %41 = vector.broadcast %cst_13 : f32 to vector<2x96xf32>
    %42 = arith.addf %41, %40 : vector<2x96xf32>
    %43 = arith.divf %41, %42 : vector<2x96xf32>
    %44 = vector.extract_strided_slice %37 {offsets = [0, 96], sizes = [2, 32], strides = [1, 1]} : vector<2x128xf32> to vector<2x32xf32>
    %45 = math.tanh %44 : vector<2x32xf32>
    %46 = vector.extract_strided_slice %43 {offsets = [0, 32], sizes = [2, 32], strides = [1, 1]} : vector<2x96xf32> to vector<2x32xf32>
    %47 = arith.mulf %46, %29 : vector<2x32xf32>
    %48 = vector.extract_strided_slice %43 {offsets = [0, 0], sizes = [2, 32], strides = [1, 1]} : vector<2x96xf32> to vector<2x32xf32>
    %49 = arith.mulf %48, %45 : vector<2x32xf32>
    %50 = arith.addf %47, %49 : vector<2x32xf32>
    %51 = vector.extract_strided_slice %43 {offsets = [0, 64], sizes = [2, 32], strides = [1, 1]} : vector<2x96xf32> to vector<2x32xf32>
    %52 = math.tanh %50 : vector<2x32xf32>
    %53 = arith.mulf %51, %52 : vector<2x32xf32>
    %54 = vector.extract_strided_slice %9 {offsets = [2, 0, 0], sizes = [1, 2, 128], strides = [1, 1, 1]} : vector<8x2x128xf32> to vector<1x2x128xf32>
    %55 = vector.shape_cast %54 : vector<1x2x128xf32> to vector<2x128xf32>
    %56 = arith.truncf %53 : vector<2x32xf32> to vector<2x32xbf16>
    %cst_14 = arith.constant dense<0.000000e+00> : vector<2x128xf32>
    %57 = tpu.matmul %56, %1, %cst_14 {dimension_numbers = #tpu.dot_dimension_numbers<[1], [0], [0], [1], [0, 0, 1, 1], [], []>} : vector<2x32xbf16>, vector<32x128xbf16>, vector<2x128xf32> -> vector<2x128xf32>
    %58 = arith.addf %55, %57 : vector<2x128xf32>
    %59 = vector.extract_strided_slice %58 {offsets = [0, 0], sizes = [2, 96], strides = [1, 1]} : vector<2x128xf32> to vector<2x96xf32>
    %60 = arith.negf %59 : vector<2x96xf32>
    %61 = math.exp %60 : vector<2x96xf32>
    %cst_15 = arith.constant 1.000000e+00 : f32
    %62 = vector.broadcast %cst_15 : f32 to vector<2x96xf32>
    %63 = arith.addf %62, %61 : vector<2x96xf32>
    %64 = arith.divf %62, %63 : vector<2x96xf32>
    %65 = vector.extract_strided_slice %58 {offsets = [0, 96], sizes = [2, 32], strides = [1, 1]} : vector<2x128xf32> to vector<2x32xf32>
    %66 = math.tanh %65 : vector<2x32xf32>
    %67 = vector.extract_strided_slice %64 {offsets = [0, 32], sizes = [2, 32], strides = [1, 1]} : vector<2x96xf32> to vector<2x32xf32>
    %68 = arith.mulf %67, %50 : vector<2x32xf32>
    %69 = vector.extract_strided_slice %64 {offsets = [0, 0], sizes = [2, 32], strides = [1, 1]} : vector<2x96xf32> to vector<2x32xf32>
    %70 = arith.mulf %69, %66 : vector<2x32xf32>
    %71 = arith.addf %68, %70 : vector<2x32xf32>
    %72 = vector.extract_strided_slice %64 {offsets = [0, 64], sizes = [2, 32], strides = [1, 1]} : vector<2x96xf32> to vector<2x32xf32>
    %73 = math.tanh %71 : vector<2x32xf32>
    %74 = arith.mulf %72, %73 : vector<2x32xf32>
    %75 = vector.extract_strided_slice %9 {offsets = [3, 0, 0], sizes = [1, 2, 128], strides = [1, 1, 1]} : vector<8x2x128xf32> to vector<1x2x128xf32>
    %76 = vector.shape_cast %75 : vector<1x2x128xf32> to vector<2x128xf32>
    %77 = arith.truncf %74 : vector<2x32xf32> to vector<2x32xbf16>
    %cst_16 = arith.constant dense<0.000000e+00> : vector<2x128xf32>
    %78 = tpu.matmul %77, %1, %cst_16 {dimension_numbers = #tpu.dot_dimension_numbers<[1], [0], [0], [1], [0, 0, 1, 1], [], []>} : vector<2x32xbf16>, vector<32x128xbf16>, vector<2x128xf32> -> vector<2x128xf32>
    %79 = arith.addf %76, %78 : vector<2x128xf32>
    %80 = vector.extract_strided_slice %79 {offsets = [0, 0], sizes = [2, 96], strides = [1, 1]} : vector<2x128xf32> to vector<2x96xf32>
    %81 = arith.negf %80 : vector<2x96xf32>
    %82 = math.exp %81 : vector<2x96xf32>
    %cst_17 = arith.constant 1.000000e+00 : f32
    %83 = vector.broadcast %cst_17 : f32 to vector<2x96xf32>
    %84 = arith.addf %83, %82 : vector<2x96xf32>
    %85 = arith.divf %83, %84 : vector<2x96xf32>
    %86 = vector.extract_strided_slice %79 {offsets = [0, 96], sizes = [2, 32], strides = [1, 1]} : vector<2x128xf32> to vector<2x32xf32>
    %87 = math.tanh %86 : vector<2x32xf32>
    %88 = vector.extract_strided_slice %85 {offsets = [0, 32], sizes = [2, 32], strides = [1, 1]} : vector<2x96xf32> to vector<2x32xf32>
    %89 = arith.mulf %88, %71 : vector<2x32xf32>
    %90 = vector.extract_strided_slice %85 {offsets = [0, 0], sizes = [2, 32], strides = [1, 1]} : vector<2x96xf32> to vector<2x32xf32>
    %91 = arith.mulf %90, %87 : vector<2x32xf32>
    %92 = arith.addf %89, %91 : vector<2x32xf32>
    %93 = vector.extract_strided_slice %85 {offsets = [0, 64], sizes = [2, 32], strides = [1, 1]} : vector<2x96xf32> to vector<2x32xf32>
    %94 = math.tanh %92 : vector<2x32xf32>
    %95 = arith.mulf %93, %94 : vector<2x32xf32>
    %96 = vector.extract_strided_slice %9 {offsets = [4, 0, 0], sizes = [1, 2, 128], strides = [1, 1, 1]} : vector<8x2x128xf32> to vector<1x2x128xf32>
    %97 = vector.shape_cast %96 : vector<1x2x128xf32> to vector<2x128xf32>
    %98 = arith.truncf %95 : vector<2x32xf32> to vector<2x32xbf16>
    %cst_18 = arith.constant dense<0.000000e+00> : vector<2x128xf32>
    %99 = tpu.matmul %98, %1, %cst_18 {dimension_numbers = #tpu.dot_dimension_numbers<[1], [0], [0], [1], [0, 0, 1, 1], [], []>} : vector<2x32xbf16>, vector<32x128xbf16>, vector<2x128xf32> -> vector<2x128xf32>
    %100 = arith.addf %97, %99 : vector<2x128xf32>
    %101 = vector.extract_strided_slice %100 {offsets = [0, 0], sizes = [2, 96], strides = [1, 1]} : vector<2x128xf32> to vector<2x96xf32>
    %102 = arith.negf %101 : vector<2x96xf32>
    %103 = math.exp %102 : vector<2x96xf32>
    %cst_19 = arith.constant 1.000000e+00 : f32
    %104 = vector.broadcast %cst_19 : f32 to vector<2x96xf32>
    %105 = arith.addf %104, %103 : vector<2x96xf32>
    %106 = arith.divf %104, %105 : vector<2x96xf32>
    %107 = vector.extract_strided_slice %100 {offsets = [0, 96], sizes = [2, 32], strides = [1, 1]} : vector<2x128xf32> to vector<2x32xf32>
    %108 = math.tanh %107 : vector<2x32xf32>
    %109 = vector.extract_strided_slice %106 {offsets = [0, 32], sizes = [2, 32], strides = [1, 1]} : vector<2x96xf32> to vector<2x32xf32>
    %110 = arith.mulf %109, %92 : vector<2x32xf32>
    %111 = vector.extract_strided_slice %106 {offsets = [0, 0], sizes = [2, 32], strides = [1, 1]} : vector<2x96xf32> to vector<2x32xf32>
    %112 = arith.mulf %111, %108 : vector<2x32xf32>
    %113 = arith.addf %110, %112 : vector<2x32xf32>
    %114 = vector.extract_strided_slice %106 {offsets = [0, 64], sizes = [2, 32], strides = [1, 1]} : vector<2x96xf32> to vector<2x32xf32>
    %115 = math.tanh %113 : vector<2x32xf32>
    %116 = arith.mulf %114, %115 : vector<2x32xf32>
    %117 = vector.extract_strided_slice %9 {offsets = [5, 0, 0], sizes = [1, 2, 128], strides = [1, 1, 1]} : vector<8x2x128xf32> to vector<1x2x128xf32>
    %118 = vector.shape_cast %117 : vector<1x2x128xf32> to vector<2x128xf32>
    %119 = arith.truncf %116 : vector<2x32xf32> to vector<2x32xbf16>
    %cst_20 = arith.constant dense<0.000000e+00> : vector<2x128xf32>
    %120 = tpu.matmul %119, %1, %cst_20 {dimension_numbers = #tpu.dot_dimension_numbers<[1], [0], [0], [1], [0, 0, 1, 1], [], []>} : vector<2x32xbf16>, vector<32x128xbf16>, vector<2x128xf32> -> vector<2x128xf32>
    %121 = arith.addf %118, %120 : vector<2x128xf32>
    %122 = vector.extract_strided_slice %121 {offsets = [0, 0], sizes = [2, 96], strides = [1, 1]} : vector<2x128xf32> to vector<2x96xf32>
    %123 = arith.negf %122 : vector<2x96xf32>
    %124 = math.exp %123 : vector<2x96xf32>
    %cst_21 = arith.constant 1.000000e+00 : f32
    %125 = vector.broadcast %cst_21 : f32 to vector<2x96xf32>
    %126 = arith.addf %125, %124 : vector<2x96xf32>
    %127 = arith.divf %125, %126 : vector<2x96xf32>
    %128 = vector.extract_strided_slice %121 {offsets = [0, 96], sizes = [2, 32], strides = [1, 1]} : vector<2x128xf32> to vector<2x32xf32>
    %129 = math.tanh %128 : vector<2x32xf32>
    %130 = vector.extract_strided_slice %127 {offsets = [0, 32], sizes = [2, 32], strides = [1, 1]} : vector<2x96xf32> to vector<2x32xf32>
    %131 = arith.mulf %130, %113 : vector<2x32xf32>
    %132 = vector.extract_strided_slice %127 {offsets = [0, 0], sizes = [2, 32], strides = [1, 1]} : vector<2x96xf32> to vector<2x32xf32>
    %133 = arith.mulf %132, %129 : vector<2x32xf32>
    %134 = arith.addf %131, %133 : vector<2x32xf32>
    %135 = vector.extract_strided_slice %127 {offsets = [0, 64], sizes = [2, 32], strides = [1, 1]} : vector<2x96xf32> to vector<2x32xf32>
    %136 = math.tanh %134 : vector<2x32xf32>
    %137 = arith.mulf %135, %136 : vector<2x32xf32>
    %138 = vector.extract_strided_slice %9 {offsets = [6, 0, 0], sizes = [1, 2, 128], strides = [1, 1, 1]} : vector<8x2x128xf32> to vector<1x2x128xf32>
    %139 = vector.shape_cast %138 : vector<1x2x128xf32> to vector<2x128xf32>
    %140 = arith.truncf %137 : vector<2x32xf32> to vector<2x32xbf16>
    %cst_22 = arith.constant dense<0.000000e+00> : vector<2x128xf32>
    %141 = tpu.matmul %140, %1, %cst_22 {dimension_numbers = #tpu.dot_dimension_numbers<[1], [0], [0], [1], [0, 0, 1, 1], [], []>} : vector<2x32xbf16>, vector<32x128xbf16>, vector<2x128xf32> -> vector<2x128xf32>
    %142 = arith.addf %139, %141 : vector<2x128xf32>
    %143 = vector.extract_strided_slice %142 {offsets = [0, 0], sizes = [2, 96], strides = [1, 1]} : vector<2x128xf32> to vector<2x96xf32>
    %144 = arith.negf %143 : vector<2x96xf32>
    %145 = math.exp %144 : vector<2x96xf32>
    %cst_23 = arith.constant 1.000000e+00 : f32
    %146 = vector.broadcast %cst_23 : f32 to vector<2x96xf32>
    %147 = arith.addf %146, %145 : vector<2x96xf32>
    %148 = arith.divf %146, %147 : vector<2x96xf32>
    %149 = vector.extract_strided_slice %142 {offsets = [0, 96], sizes = [2, 32], strides = [1, 1]} : vector<2x128xf32> to vector<2x32xf32>
    %150 = math.tanh %149 : vector<2x32xf32>
    %151 = vector.extract_strided_slice %148 {offsets = [0, 32], sizes = [2, 32], strides = [1, 1]} : vector<2x96xf32> to vector<2x32xf32>
    %152 = arith.mulf %151, %134 : vector<2x32xf32>
    %153 = vector.extract_strided_slice %148 {offsets = [0, 0], sizes = [2, 32], strides = [1, 1]} : vector<2x96xf32> to vector<2x32xf32>
    %154 = arith.mulf %153, %150 : vector<2x32xf32>
    %155 = arith.addf %152, %154 : vector<2x32xf32>
    %156 = vector.extract_strided_slice %148 {offsets = [0, 64], sizes = [2, 32], strides = [1, 1]} : vector<2x96xf32> to vector<2x32xf32>
    %157 = math.tanh %155 : vector<2x32xf32>
    %158 = arith.mulf %156, %157 : vector<2x32xf32>
    %159 = vector.extract_strided_slice %9 {offsets = [7, 0, 0], sizes = [1, 2, 128], strides = [1, 1, 1]} : vector<8x2x128xf32> to vector<1x2x128xf32>
    %160 = vector.shape_cast %159 : vector<1x2x128xf32> to vector<2x128xf32>
    %161 = arith.truncf %158 : vector<2x32xf32> to vector<2x32xbf16>
    %cst_24 = arith.constant dense<0.000000e+00> : vector<2x128xf32>
    %162 = tpu.matmul %161, %1, %cst_24 {dimension_numbers = #tpu.dot_dimension_numbers<[1], [0], [0], [1], [0, 0, 1, 1], [], []>} : vector<2x32xbf16>, vector<32x128xbf16>, vector<2x128xf32> -> vector<2x128xf32>
    %163 = arith.addf %160, %162 : vector<2x128xf32>
    %164 = vector.extract_strided_slice %163 {offsets = [0, 0], sizes = [2, 96], strides = [1, 1]} : vector<2x128xf32> to vector<2x96xf32>
    %165 = arith.negf %164 : vector<2x96xf32>
    %166 = math.exp %165 : vector<2x96xf32>
    %cst_25 = arith.constant 1.000000e+00 : f32
    %167 = vector.broadcast %cst_25 : f32 to vector<2x96xf32>
    %168 = arith.addf %167, %166 : vector<2x96xf32>
    %169 = arith.divf %167, %168 : vector<2x96xf32>
    %170 = vector.extract_strided_slice %163 {offsets = [0, 96], sizes = [2, 32], strides = [1, 1]} : vector<2x128xf32> to vector<2x32xf32>
    %171 = math.tanh %170 : vector<2x32xf32>
    %172 = vector.extract_strided_slice %169 {offsets = [0, 32], sizes = [2, 32], strides = [1, 1]} : vector<2x96xf32> to vector<2x32xf32>
    %173 = arith.mulf %172, %155 : vector<2x32xf32>
    %174 = vector.extract_strided_slice %169 {offsets = [0, 0], sizes = [2, 32], strides = [1, 1]} : vector<2x96xf32> to vector<2x32xf32>
    %175 = arith.mulf %174, %171 : vector<2x32xf32>
    %176 = arith.addf %173, %175 : vector<2x32xf32>
    %177 = vector.extract_strided_slice %169 {offsets = [0, 64], sizes = [2, 32], strides = [1, 1]} : vector<2x96xf32> to vector<2x32xf32>
    %178 = math.tanh %176 : vector<2x32xf32>
    %179 = arith.mulf %177, %178 : vector<2x32xf32>
    %c0_26 = arith.constant 0 : index
    %c0_27 = arith.constant 0 : index
    %180 = vector.load %arg4[%c0_26, %c0_27] : memref<32x128xbf16, #tpu.memory_space<vmem>>, vector<32x128xbf16>
    %c0_28 = arith.constant 0 : index
    %c0_29 = arith.constant 0 : index
    %181 = vector.load %arg5[%c0_28, %c0_29] : memref<32x128xbf16, #tpu.memory_space<vmem>>, vector<32x128xbf16>
    %c0_30 = arith.constant 0 : index
    %c0_31 = arith.constant 0 : index
    %182 = vector.load %arg6[%c0_30, %c0_31] : memref<1x128xf32, #tpu.memory_space<vmem>>, vector<1x128xf32>
    %cst_32 = arith.constant 0.000000e+00 : f32
    %183 = vector.broadcast %cst_32 : f32 to vector<2x32xf32>
    %cst_33 = arith.constant 0.000000e+00 : f32
    %184 = vector.broadcast %cst_33 : f32 to vector<2x32xf32>
    %185 = arith.truncf %32 : vector<2x32xf32> to vector<2x32xbf16>
    %cst_34 = arith.constant dense<0.000000e+00> : vector<2x128xf32>
    %186 = tpu.matmul %185, %180, %cst_34 {dimension_numbers = #tpu.dot_dimension_numbers<[1], [0], [0], [1], [0, 0, 1, 1], [], []>} : vector<2x32xbf16>, vector<32x128xbf16>, vector<2x128xf32> -> vector<2x128xf32>
    %187 = vector.broadcast %182 : vector<1x128xf32> to vector<2x128xf32>
    %188 = arith.addf %186, %187 : vector<2x128xf32>
    %189 = arith.truncf %183 : vector<2x32xf32> to vector<2x32xbf16>
    %cst_35 = arith.constant dense<0.000000e+00> : vector<2x128xf32>
    %190 = tpu.matmul %189, %181, %cst_35 {dimension_numbers = #tpu.dot_dimension_numbers<[1], [0], [0], [1], [0, 0, 1, 1], [], []>} : vector<2x32xbf16>, vector<32x128xbf16>, vector<2x128xf32> -> vector<2x128xf32>
    %191 = arith.addf %188, %190 : vector<2x128xf32>
    %192 = vector.extract_strided_slice %191 {offsets = [0, 0], sizes = [2, 96], strides = [1, 1]} : vector<2x128xf32> to vector<2x96xf32>
    %193 = arith.negf %192 : vector<2x96xf32>
    %194 = math.exp %193 : vector<2x96xf32>
    %cst_36 = arith.constant 1.000000e+00 : f32
    %195 = vector.broadcast %cst_36 : f32 to vector<2x96xf32>
    %196 = arith.addf %195, %194 : vector<2x96xf32>
    %197 = arith.divf %195, %196 : vector<2x96xf32>
    %198 = vector.extract_strided_slice %191 {offsets = [0, 96], sizes = [2, 32], strides = [1, 1]} : vector<2x128xf32> to vector<2x32xf32>
    %199 = math.tanh %198 : vector<2x32xf32>
    %200 = vector.extract_strided_slice %197 {offsets = [0, 32], sizes = [2, 32], strides = [1, 1]} : vector<2x96xf32> to vector<2x32xf32>
    %201 = arith.mulf %200, %184 : vector<2x32xf32>
    %202 = vector.extract_strided_slice %197 {offsets = [0, 0], sizes = [2, 32], strides = [1, 1]} : vector<2x96xf32> to vector<2x32xf32>
    %203 = arith.mulf %202, %199 : vector<2x32xf32>
    %204 = arith.addf %201, %203 : vector<2x32xf32>
    %205 = vector.extract_strided_slice %197 {offsets = [0, 64], sizes = [2, 32], strides = [1, 1]} : vector<2x96xf32> to vector<2x32xf32>
    %206 = math.tanh %204 : vector<2x32xf32>
    %207 = arith.mulf %205, %206 : vector<2x32xf32>
    %208 = arith.truncf %53 : vector<2x32xf32> to vector<2x32xbf16>
    %cst_37 = arith.constant dense<0.000000e+00> : vector<2x128xf32>
    %209 = tpu.matmul %208, %180, %cst_37 {dimension_numbers = #tpu.dot_dimension_numbers<[1], [0], [0], [1], [0, 0, 1, 1], [], []>} : vector<2x32xbf16>, vector<32x128xbf16>, vector<2x128xf32> -> vector<2x128xf32>
    %210 = vector.broadcast %182 : vector<1x128xf32> to vector<2x128xf32>
    %211 = arith.addf %209, %210 : vector<2x128xf32>
    %212 = arith.truncf %207 : vector<2x32xf32> to vector<2x32xbf16>
    %cst_38 = arith.constant dense<0.000000e+00> : vector<2x128xf32>
    %213 = tpu.matmul %212, %181, %cst_38 {dimension_numbers = #tpu.dot_dimension_numbers<[1], [0], [0], [1], [0, 0, 1, 1], [], []>} : vector<2x32xbf16>, vector<32x128xbf16>, vector<2x128xf32> -> vector<2x128xf32>
    %214 = arith.addf %211, %213 : vector<2x128xf32>
    %215 = vector.extract_strided_slice %214 {offsets = [0, 0], sizes = [2, 96], strides = [1, 1]} : vector<2x128xf32> to vector<2x96xf32>
    %216 = arith.negf %215 : vector<2x96xf32>
    %217 = math.exp %216 : vector<2x96xf32>
    %cst_39 = arith.constant 1.000000e+00 : f32
    %218 = vector.broadcast %cst_39 : f32 to vector<2x96xf32>
    %219 = arith.addf %218, %217 : vector<2x96xf32>
    %220 = arith.divf %218, %219 : vector<2x96xf32>
    %221 = vector.extract_strided_slice %214 {offsets = [0, 96], sizes = [2, 32], strides = [1, 1]} : vector<2x128xf32> to vector<2x32xf32>
    %222 = math.tanh %221 : vector<2x32xf32>
    %223 = vector.extract_strided_slice %220 {offsets = [0, 32], sizes = [2, 32], strides = [1, 1]} : vector<2x96xf32> to vector<2x32xf32>
    %224 = arith.mulf %223, %204 : vector<2x32xf32>
    %225 = vector.extract_strided_slice %220 {offsets = [0, 0], sizes = [2, 32], strides = [1, 1]} : vector<2x96xf32> to vector<2x32xf32>
    %226 = arith.mulf %225, %222 : vector<2x32xf32>
    %227 = arith.addf %224, %226 : vector<2x32xf32>
    %228 = vector.extract_strided_slice %220 {offsets = [0, 64], sizes = [2, 32], strides = [1, 1]} : vector<2x96xf32> to vector<2x32xf32>
    %229 = math.tanh %227 : vector<2x32xf32>
    %230 = arith.mulf %228, %229 : vector<2x32xf32>
    %231 = arith.truncf %74 : vector<2x32xf32> to vector<2x32xbf16>
    %cst_40 = arith.constant dense<0.000000e+00> : vector<2x128xf32>
    %232 = tpu.matmul %231, %180, %cst_40 {dimension_numbers = #tpu.dot_dimension_numbers<[1], [0], [0], [1], [0, 0, 1, 1], [], []>} : vector<2x32xbf16>, vector<32x128xbf16>, vector<2x128xf32> -> vector<2x128xf32>
    %233 = vector.broadcast %182 : vector<1x128xf32> to vector<2x128xf32>
    %234 = arith.addf %232, %233 : vector<2x128xf32>
    %235 = arith.truncf %230 : vector<2x32xf32> to vector<2x32xbf16>
    %cst_41 = arith.constant dense<0.000000e+00> : vector<2x128xf32>
    %236 = tpu.matmul %235, %181, %cst_41 {dimension_numbers = #tpu.dot_dimension_numbers<[1], [0], [0], [1], [0, 0, 1, 1], [], []>} : vector<2x32xbf16>, vector<32x128xbf16>, vector<2x128xf32> -> vector<2x128xf32>
    %237 = arith.addf %234, %236 : vector<2x128xf32>
    %238 = vector.extract_strided_slice %237 {offsets = [0, 0], sizes = [2, 96], strides = [1, 1]} : vector<2x128xf32> to vector<2x96xf32>
    %239 = arith.negf %238 : vector<2x96xf32>
    %240 = math.exp %239 : vector<2x96xf32>
    %cst_42 = arith.constant 1.000000e+00 : f32
    %241 = vector.broadcast %cst_42 : f32 to vector<2x96xf32>
    %242 = arith.addf %241, %240 : vector<2x96xf32>
    %243 = arith.divf %241, %242 : vector<2x96xf32>
    %244 = vector.extract_strided_slice %237 {offsets = [0, 96], sizes = [2, 32], strides = [1, 1]} : vector<2x128xf32> to vector<2x32xf32>
    %245 = math.tanh %244 : vector<2x32xf32>
    %246 = vector.extract_strided_slice %243 {offsets = [0, 32], sizes = [2, 32], strides = [1, 1]} : vector<2x96xf32> to vector<2x32xf32>
    %247 = arith.mulf %246, %227 : vector<2x32xf32>
    %248 = vector.extract_strided_slice %243 {offsets = [0, 0], sizes = [2, 32], strides = [1, 1]} : vector<2x96xf32> to vector<2x32xf32>
    %249 = arith.mulf %248, %245 : vector<2x32xf32>
    %250 = arith.addf %247, %249 : vector<2x32xf32>
    %251 = vector.extract_strided_slice %243 {offsets = [0, 64], sizes = [2, 32], strides = [1, 1]} : vector<2x96xf32> to vector<2x32xf32>
    %252 = math.tanh %250 : vector<2x32xf32>
    %253 = arith.mulf %251, %252 : vector<2x32xf32>
    %254 = arith.truncf %95 : vector<2x32xf32> to vector<2x32xbf16>
    %cst_43 = arith.constant dense<0.000000e+00> : vector<2x128xf32>
    %255 = tpu.matmul %254, %180, %cst_43 {dimension_numbers = #tpu.dot_dimension_numbers<[1], [0], [0], [1], [0, 0, 1, 1], [], []>} : vector<2x32xbf16>, vector<32x128xbf16>, vector<2x128xf32> -> vector<2x128xf32>
    %256 = vector.broadcast %182 : vector<1x128xf32> to vector<2x128xf32>
    %257 = arith.addf %255, %256 : vector<2x128xf32>
    %258 = arith.truncf %253 : vector<2x32xf32> to vector<2x32xbf16>
    %cst_44 = arith.constant dense<0.000000e+00> : vector<2x128xf32>
    %259 = tpu.matmul %258, %181, %cst_44 {dimension_numbers = #tpu.dot_dimension_numbers<[1], [0], [0], [1], [0, 0, 1, 1], [], []>} : vector<2x32xbf16>, vector<32x128xbf16>, vector<2x128xf32> -> vector<2x128xf32>
    %260 = arith.addf %257, %259 : vector<2x128xf32>
    %261 = vector.extract_strided_slice %260 {offsets = [0, 0], sizes = [2, 96], strides = [1, 1]} : vector<2x128xf32> to vector<2x96xf32>
    %262 = arith.negf %261 : vector<2x96xf32>
    %263 = math.exp %262 : vector<2x96xf32>
    %cst_45 = arith.constant 1.000000e+00 : f32
    %264 = vector.broadcast %cst_45 : f32 to vector<2x96xf32>
    %265 = arith.addf %264, %263 : vector<2x96xf32>
    %266 = arith.divf %264, %265 : vector<2x96xf32>
    %267 = vector.extract_strided_slice %260 {offsets = [0, 96], sizes = [2, 32], strides = [1, 1]} : vector<2x128xf32> to vector<2x32xf32>
    %268 = math.tanh %267 : vector<2x32xf32>
    %269 = vector.extract_strided_slice %266 {offsets = [0, 32], sizes = [2, 32], strides = [1, 1]} : vector<2x96xf32> to vector<2x32xf32>
    %270 = arith.mulf %269, %250 : vector<2x32xf32>
    %271 = vector.extract_strided_slice %266 {offsets = [0, 0], sizes = [2, 32], strides = [1, 1]} : vector<2x96xf32> to vector<2x32xf32>
    %272 = arith.mulf %271, %268 : vector<2x32xf32>
    %273 = arith.addf %270, %272 : vector<2x32xf32>
    %274 = vector.extract_strided_slice %266 {offsets = [0, 64], sizes = [2, 32], strides = [1, 1]} : vector<2x96xf32> to vector<2x32xf32>
    %275 = math.tanh %273 : vector<2x32xf32>
    %276 = arith.mulf %274, %275 : vector<2x32xf32>
    %277 = arith.truncf %116 : vector<2x32xf32> to vector<2x32xbf16>
    %cst_46 = arith.constant dense<0.000000e+00> : vector<2x128xf32>
    %278 = tpu.matmul %277, %180, %cst_46 {dimension_numbers = #tpu.dot_dimension_numbers<[1], [0], [0], [1], [0, 0, 1, 1], [], []>} : vector<2x32xbf16>, vector<32x128xbf16>, vector<2x128xf32> -> vector<2x128xf32>
    %279 = vector.broadcast %182 : vector<1x128xf32> to vector<2x128xf32>
    %280 = arith.addf %278, %279 : vector<2x128xf32>
    %281 = arith.truncf %276 : vector<2x32xf32> to vector<2x32xbf16>
    %cst_47 = arith.constant dense<0.000000e+00> : vector<2x128xf32>
    %282 = tpu.matmul %281, %181, %cst_47 {dimension_numbers = #tpu.dot_dimension_numbers<[1], [0], [0], [1], [0, 0, 1, 1], [], []>} : vector<2x32xbf16>, vector<32x128xbf16>, vector<2x128xf32> -> vector<2x128xf32>
    %283 = arith.addf %280, %282 : vector<2x128xf32>
    %284 = vector.extract_strided_slice %283 {offsets = [0, 0], sizes = [2, 96], strides = [1, 1]} : vector<2x128xf32> to vector<2x96xf32>
    %285 = arith.negf %284 : vector<2x96xf32>
    %286 = math.exp %285 : vector<2x96xf32>
    %cst_48 = arith.constant 1.000000e+00 : f32
    %287 = vector.broadcast %cst_48 : f32 to vector<2x96xf32>
    %288 = arith.addf %287, %286 : vector<2x96xf32>
    %289 = arith.divf %287, %288 : vector<2x96xf32>
    %290 = vector.extract_strided_slice %283 {offsets = [0, 96], sizes = [2, 32], strides = [1, 1]} : vector<2x128xf32> to vector<2x32xf32>
    %291 = math.tanh %290 : vector<2x32xf32>
    %292 = vector.extract_strided_slice %289 {offsets = [0, 32], sizes = [2, 32], strides = [1, 1]} : vector<2x96xf32> to vector<2x32xf32>
    %293 = arith.mulf %292, %273 : vector<2x32xf32>
    %294 = vector.extract_strided_slice %289 {offsets = [0, 0], sizes = [2, 32], strides = [1, 1]} : vector<2x96xf32> to vector<2x32xf32>
    %295 = arith.mulf %294, %291 : vector<2x32xf32>
    %296 = arith.addf %293, %295 : vector<2x32xf32>
    %297 = vector.extract_strided_slice %289 {offsets = [0, 64], sizes = [2, 32], strides = [1, 1]} : vector<2x96xf32> to vector<2x32xf32>
    %298 = math.tanh %296 : vector<2x32xf32>
    %299 = arith.mulf %297, %298 : vector<2x32xf32>
    %300 = arith.truncf %137 : vector<2x32xf32> to vector<2x32xbf16>
    %cst_49 = arith.constant dense<0.000000e+00> : vector<2x128xf32>
    %301 = tpu.matmul %300, %180, %cst_49 {dimension_numbers = #tpu.dot_dimension_numbers<[1], [0], [0], [1], [0, 0, 1, 1], [], []>} : vector<2x32xbf16>, vector<32x128xbf16>, vector<2x128xf32> -> vector<2x128xf32>
    %302 = vector.broadcast %182 : vector<1x128xf32> to vector<2x128xf32>
    %303 = arith.addf %301, %302 : vector<2x128xf32>
    %304 = arith.truncf %299 : vector<2x32xf32> to vector<2x32xbf16>
    %cst_50 = arith.constant dense<0.000000e+00> : vector<2x128xf32>
    %305 = tpu.matmul %304, %181, %cst_50 {dimension_numbers = #tpu.dot_dimension_numbers<[1], [0], [0], [1], [0, 0, 1, 1], [], []>} : vector<2x32xbf16>, vector<32x128xbf16>, vector<2x128xf32> -> vector<2x128xf32>
    %306 = arith.addf %303, %305 : vector<2x128xf32>
    %307 = vector.extract_strided_slice %306 {offsets = [0, 0], sizes = [2, 96], strides = [1, 1]} : vector<2x128xf32> to vector<2x96xf32>
    %308 = arith.negf %307 : vector<2x96xf32>
    %309 = math.exp %308 : vector<2x96xf32>
    %cst_51 = arith.constant 1.000000e+00 : f32
    %310 = vector.broadcast %cst_51 : f32 to vector<2x96xf32>
    %311 = arith.addf %310, %309 : vector<2x96xf32>
    %312 = arith.divf %310, %311 : vector<2x96xf32>
    %313 = vector.extract_strided_slice %306 {offsets = [0, 96], sizes = [2, 32], strides = [1, 1]} : vector<2x128xf32> to vector<2x32xf32>
    %314 = math.tanh %313 : vector<2x32xf32>
    %315 = vector.extract_strided_slice %312 {offsets = [0, 32], sizes = [2, 32], strides = [1, 1]} : vector<2x96xf32> to vector<2x32xf32>
    %316 = arith.mulf %315, %296 : vector<2x32xf32>
    %317 = vector.extract_strided_slice %312 {offsets = [0, 0], sizes = [2, 32], strides = [1, 1]} : vector<2x96xf32> to vector<2x32xf32>
    %318 = arith.mulf %317, %314 : vector<2x32xf32>
    %319 = arith.addf %316, %318 : vector<2x32xf32>
    %320 = vector.extract_strided_slice %312 {offsets = [0, 64], sizes = [2, 32], strides = [1, 1]} : vector<2x96xf32> to vector<2x32xf32>
    %321 = math.tanh %319 : vector<2x32xf32>
    %322 = arith.mulf %320, %321 : vector<2x32xf32>
    %323 = arith.truncf %158 : vector<2x32xf32> to vector<2x32xbf16>
    %cst_52 = arith.constant dense<0.000000e+00> : vector<2x128xf32>
    %324 = tpu.matmul %323, %180, %cst_52 {dimension_numbers = #tpu.dot_dimension_numbers<[1], [0], [0], [1], [0, 0, 1, 1], [], []>} : vector<2x32xbf16>, vector<32x128xbf16>, vector<2x128xf32> -> vector<2x128xf32>
    %325 = vector.broadcast %182 : vector<1x128xf32> to vector<2x128xf32>
    %326 = arith.addf %324, %325 : vector<2x128xf32>
    %327 = arith.truncf %322 : vector<2x32xf32> to vector<2x32xbf16>
    %cst_53 = arith.constant dense<0.000000e+00> : vector<2x128xf32>
    %328 = tpu.matmul %327, %181, %cst_53 {dimension_numbers = #tpu.dot_dimension_numbers<[1], [0], [0], [1], [0, 0, 1, 1], [], []>} : vector<2x32xbf16>, vector<32x128xbf16>, vector<2x128xf32> -> vector<2x128xf32>
    %329 = arith.addf %326, %328 : vector<2x128xf32>
    %330 = vector.extract_strided_slice %329 {offsets = [0, 0], sizes = [2, 96], strides = [1, 1]} : vector<2x128xf32> to vector<2x96xf32>
    %331 = arith.negf %330 : vector<2x96xf32>
    %332 = math.exp %331 : vector<2x96xf32>
    %cst_54 = arith.constant 1.000000e+00 : f32
    %333 = vector.broadcast %cst_54 : f32 to vector<2x96xf32>
    %334 = arith.addf %333, %332 : vector<2x96xf32>
    %335 = arith.divf %333, %334 : vector<2x96xf32>
    %336 = vector.extract_strided_slice %329 {offsets = [0, 96], sizes = [2, 32], strides = [1, 1]} : vector<2x128xf32> to vector<2x32xf32>
    %337 = math.tanh %336 : vector<2x32xf32>
    %338 = vector.extract_strided_slice %335 {offsets = [0, 32], sizes = [2, 32], strides = [1, 1]} : vector<2x96xf32> to vector<2x32xf32>
    %339 = arith.mulf %338, %319 : vector<2x32xf32>
    %340 = vector.extract_strided_slice %335 {offsets = [0, 0], sizes = [2, 32], strides = [1, 1]} : vector<2x96xf32> to vector<2x32xf32>
    %341 = arith.mulf %340, %337 : vector<2x32xf32>
    %342 = arith.addf %339, %341 : vector<2x32xf32>
    %343 = vector.extract_strided_slice %335 {offsets = [0, 64], sizes = [2, 32], strides = [1, 1]} : vector<2x96xf32> to vector<2x32xf32>
    %344 = math.tanh %342 : vector<2x32xf32>
    %345 = arith.mulf %343, %344 : vector<2x32xf32>
    %346 = arith.truncf %179 : vector<2x32xf32> to vector<2x32xbf16>
    %cst_55 = arith.constant dense<0.000000e+00> : vector<2x128xf32>
    %347 = tpu.matmul %346, %180, %cst_55 {dimension_numbers = #tpu.dot_dimension_numbers<[1], [0], [0], [1], [0, 0, 1, 1], [], []>} : vector<2x32xbf16>, vector<32x128xbf16>, vector<2x128xf32> -> vector<2x128xf32>
    %348 = vector.broadcast %182 : vector<1x128xf32> to vector<2x128xf32>
    %349 = arith.addf %347, %348 : vector<2x128xf32>
    %350 = arith.truncf %345 : vector<2x32xf32> to vector<2x32xbf16>
    %cst_56 = arith.constant dense<0.000000e+00> : vector<2x128xf32>
    %351 = tpu.matmul %350, %181, %cst_56 {dimension_numbers = #tpu.dot_dimension_numbers<[1], [0], [0], [1], [0, 0, 1, 1], [], []>} : vector<2x32xbf16>, vector<32x128xbf16>, vector<2x128xf32> -> vector<2x128xf32>
    %352 = arith.addf %349, %351 : vector<2x128xf32>
    %353 = vector.extract_strided_slice %352 {offsets = [0, 0], sizes = [2, 96], strides = [1, 1]} : vector<2x128xf32> to vector<2x96xf32>
    %354 = arith.negf %353 : vector<2x96xf32>
    %355 = math.exp %354 : vector<2x96xf32>
    %cst_57 = arith.constant 1.000000e+00 : f32
    %356 = vector.broadcast %cst_57 : f32 to vector<2x96xf32>
    %357 = arith.addf %356, %355 : vector<2x96xf32>
    %358 = arith.divf %356, %357 : vector<2x96xf32>
    %359 = vector.extract_strided_slice %352 {offsets = [0, 96], sizes = [2, 32], strides = [1, 1]} : vector<2x128xf32> to vector<2x32xf32>
    %360 = math.tanh %359 : vector<2x32xf32>
    %361 = vector.extract_strided_slice %358 {offsets = [0, 32], sizes = [2, 32], strides = [1, 1]} : vector<2x96xf32> to vector<2x32xf32>
    %362 = arith.mulf %361, %342 : vector<2x32xf32>
    %363 = vector.extract_strided_slice %358 {offsets = [0, 0], sizes = [2, 32], strides = [1, 1]} : vector<2x96xf32> to vector<2x32xf32>
    %364 = arith.mulf %363, %360 : vector<2x32xf32>
    %365 = arith.addf %362, %364 : vector<2x32xf32>
    %366 = vector.extract_strided_slice %358 {offsets = [0, 64], sizes = [2, 32], strides = [1, 1]} : vector<2x96xf32> to vector<2x32xf32>
    %367 = math.tanh %365 : vector<2x32xf32>
    %368 = arith.mulf %366, %367 : vector<2x32xf32>
    %369 = vector.shape_cast %207 : vector<2x32xf32> to vector<1x2x32xf32>
    %370 = vector.shape_cast %230 : vector<2x32xf32> to vector<1x2x32xf32>
    %371 = vector.shape_cast %253 : vector<2x32xf32> to vector<1x2x32xf32>
    %372 = vector.shape_cast %276 : vector<2x32xf32> to vector<1x2x32xf32>
    %373 = vector.shape_cast %299 : vector<2x32xf32> to vector<1x2x32xf32>
    %374 = vector.shape_cast %322 : vector<2x32xf32> to vector<1x2x32xf32>
    %375 = vector.shape_cast %345 : vector<2x32xf32> to vector<1x2x32xf32>
    %376 = vector.shape_cast %368 : vector<2x32xf32> to vector<1x2x32xf32>
    %377 = tpu.concatenate %369, %370, %371, %372, %373, %374, %375, %376 in 0 : vector<1x2x32xf32>, vector<1x2x32xf32>, vector<1x2x32xf32>, vector<1x2x32xf32>, vector<1x2x32xf32>, vector<1x2x32xf32>, vector<1x2x32xf32>, vector<1x2x32xf32> -> vector<8x2x32xf32>
    %c0_58 = arith.constant 0 : index
    %c0_59 = arith.constant 0 : index
    %c0_60 = arith.constant 0 : index
    %378 = vector.load %arg7[%c0_58, %c0_59, %c0_60] : memref<8x2x32xf32, #tpu.memory_space<vmem>>, vector<8x2x32xf32>
    tpu.vector_store %arg7[%c0_58, %c0_59, %c0_60], %377 {strides = array<i32>} : memref<8x2x32xf32, #tpu.memory_space<vmem>>, vector<8x2x32xf32>,
    return
  }
}

</mosaic_0001>

<llo_original>
// kernel: ftlstm_forward.1
$region0: #{ftlstm_forward.1}
  #allocation0 [shape = 'u32[]', space=smem, size = 0x4, offset = 0x4, fixed_abs, tag = 'smem constant byte address 0x4 - core index']
  #allocation1 [shape = 'u32[144,128]{1,0:T(1,128)}', space=vmem, size = 0x12000, scoped, tag = 'internal scratch']
  %s0 = inlined_call_operand.vmem [shape: f32[8,2,4], index: 0, kind: input, shape index: {}]
  %s1 = inlined_call_operand.vmem [shape: bf16[4,128], index: 1, kind: input, shape index: {}]
  %s2 = inlined_call_operand.vmem [shape: bf16[32,128], index: 2, kind: input, shape index: {}]
  %s3 = inlined_call_operand.vmem [shape: f32[1,128], index: 3, kind: input, shape index: {}]
  %s4 = inlined_call_operand.vmem [shape: bf16[32,128], index: 4, kind: input, shape index: {}]
  %s5 = inlined_call_operand.hbm [shape: bf16[32,128], index: 5, kind: input, shape index: {}]
  %s6 = inlined_call_operand.vmem [shape: f32[1,128], index: 6, kind: input, shape index: {}]
  %s7 = inlined_call_operand.vmem [shape: f32[8,2,32], index: 7, kind: output, shape index: {}]
  %s8 = sld [smem:[#allocation0]]
  $region42: #{ftlstm_forward.1} parent=0
    _
  %s10 = ssub.s32 1, %s8
  %s11 = scalar_select 0, %s10, %s8
  $region1: #{ftlstm_forward.1} parent=0
    #allocation2 [shape = 'u8[8192]{0}', space=vmem, size = 0x2000, scoped, tag = 'input window, operand 5, single buffered']
    #allocation3 [shape = 's32[1]{0}', space=sflag, size = 0x4, scoped, tag = 'scoped memory for ftlstm_forward.1']
    %12 = vsyncpa [#allocation3], 0
    // Predicated region
    $region2: #{ftlstm_forward.1} parent=1 // pred_check
      _
    $region3: #{ftlstm_forward.1} parent=1 // pred_check_branch
      %14 = sbr.rel (0) target = $region5
    $region4: #{ftlstm_forward.1} parent=1 // pred_region
      _
    $region5: #{ftlstm_forward.1} parent=1 // pred_fallthru
      _
    // Predicated region
    $region6: #{ftlstm_forward.1} parent=1 // pred_check
      _
    $region7: #{ftlstm_forward.1} parent=1 // pred_check_branch
      %16 = sbr.rel (0) target = $region9
    $region8: #{ftlstm_forward.1} parent=1 // pred_region
      _
    $region9: #{ftlstm_forward.1} parent=1 // pred_fallthru
      _
    // Predicated region
    $region10: #{ftlstm_forward.1} parent=1 // pred_check
      _
    $region11: #{ftlstm_forward.1} parent=1 // pred_check_branch
      %18 = sbr.rel (0) target = $region13
    $region12: #{ftlstm_forward.1} parent=1 // pred_region
      _
    $region13: #{ftlstm_forward.1} parent=1 // pred_fallthru
      _
    // Predicated region
    $region14: #{ftlstm_forward.1} parent=1 // pred_check
      _
    $region15: #{ftlstm_forward.1} parent=1 // pred_check_branch
      %20 = sbr.rel (0) target = $region17
    $region16: #{ftlstm_forward.1} parent=1 // pred_region
      _
    $region17: #{ftlstm_forward.1} parent=1 // pred_fallthru
      _
    // Predicated region
    $region18: #{ftlstm_forward.1} parent=1 // pred_check
      _
    $region19: #{ftlstm_forward.1} parent=1 // pred_check_branch
      %22 = sbr.rel (0) target = $region21
    $region20: #{ftlstm_forward.1} parent=1 // pred_region
      _
    $region21: #{ftlstm_forward.1} parent=1 // pred_fallthru
      _
    // Predicated region
    $region22: #{ftlstm_forward.1} parent=1 // pred_check
      _
    $region23: #{ftlstm_forward.1} parent=1 // pred_check_branch
      %24 = sbr.rel (0) target = $region25
    $region24: #{ftlstm_forward.1} parent=1 // pred_region
      %s26 = ssub.s32 256, 256
      %27 = vsyncadd [#allocation3], %s26
      %s28 = sshll.u32 [#allocation2], 4
      %s29 = int_to_ptr.vmem [resolvable:$true] %s28
      %34 = dma.hbm_to_vmem [thread:$0]  %s5, 256, %s29, [#allocation3], 64, 64, 4
    $region25: #{ftlstm_forward.1} parent=1 // pred_fallthru
      _
    // Predicated region
    $region26: #{ftlstm_forward.1} parent=1 // pred_check
      _
    $region27: #{ftlstm_forward.1} parent=1 // pred_check_branch
      %36 = sbr.rel (0) target = $region29
    $region28: #{ftlstm_forward.1} parent=1 // pred_region
      _
    $region29: #{ftlstm_forward.1} parent=1 // pred_fallthru
      _
    // Predicated region
    $region30: #{ftlstm_forward.1} parent=1 // pred_check
      _
    $region31: #{ftlstm_forward.1} parent=1 // pred_check_branch
      %38 = sbr.rel (0) target = $region33
    $region32: #{ftlstm_forward.1} parent=1 // pred_region
      %39 = dma.done [#allocation3], 256
    $region33: #{ftlstm_forward.1} parent=1 // pred_fallthru
      _
    %v41 = vld [vmem:[%s1] sm:$0x3]
    %v42 = vld [vmem:[%s2] sm:$0xf]
    %v43 = vld [vmem:[%s2 + $0x4] sm:$0xf]
    %v44 = vld [vmem:[%s2 + $0x8] sm:$0xf]
    %v45 = vld [vmem:[%s2 + $0xc] sm:$0xf]
    %v46 = vld [vmem:[%s3] sm:$0x1]
    %v47 = vld [vmem:[%s0] sm:$0x3]
    %v48 = vld [vmem:[%s0 + $0x2] sm:$0x3]
    %v49 = vld [vmem:[%s0 + $0x4] sm:$0x3]
    %v50 = vld [vmem:[%s0 + $0x6] sm:$0x3]
    %v51 = vld [vmem:[%s0 + $0x8] sm:$0x3]
    %v52 = vld [vmem:[%s0 + $0xa] sm:$0x3]
    %v53 = vld [vmem:[%s0 + $0xc] sm:$0x3]
    %v54 = vld [vmem:[%s0 + $0xe] sm:$0x3]
    %v63 = vcombine.low %v47, %v48
    %v64 = vcombine.low %v49, %v50
    %v66 = vunpack.c.l.s4 1983009808
    %v67 = vunpack.c.0.s8 %v66
    %v68 = vlaneseq
    %v69 = vshrl.u32 %v68, 7
    %v70 = vsub.s32 %v67, %v69
    %v71 = vrot.slane %v63, %v70
    %v73 = vunpack.c.l.s4 1983009808
    %v74 = vunpack.c.0.s8 %v73
    %v75 = vlaneseq
    %v76 = vshrl.u32 %v75, 7
    %v77 = vsub.s32 %v74, %v76
    %v78 = vrot.slane %v64, %v77
    %v79 = vcombine.low %v71, %v78
    %v80 = vcombine.low %v51, %v52
    %v81 = vcombine.low %v53, %v54
    %v83 = vunpack.c.l.s4 1983009808
    %v84 = vunpack.c.0.s8 %v83
    %v85 = vlaneseq
    %v86 = vshrl.u32 %v85, 7
    %v87 = vsub.s32 %v84, %v86
    %v88 = vrot.slane %v80, %v87
    %v90 = vunpack.c.l.s4 1983009808
    %v91 = vunpack.c.0.s8 %v90
    %v92 = vlaneseq
    %v93 = vshrl.u32 %v92, 7
    %v94 = vsub.s32 %v91, %v93
    %v95 = vrot.slane %v81, %v94
    %v96 = vcombine.low %v88, %v95
    %v99 = vpack.c.bf16 %v96, %v79
    %v101 = vlaneseq
    %v102 = vshrl.u32 %v101, 7
    %v103 = vsub.s32 0, %v102
    %v104 = vrot.slane %v46, %v103
    %vm106 = vcmask 31744
    %v108 = vsel %vm106, %v99, 0
    %vm110 = vcmask 1041408
    %v112 = vsel %vm110, %v41, 0
    %114 = vmatprep.subr.bf16.mxu0 0
    %115 = vmatpush1.bf16.msra.mxu0 %v112
    %116 = vmatprep.subr.bf16.mxu0 0
    %117 = vmatpush1.bf16.msra.mxu0 0
    %118 = vmatprep.subr.bf16.mxu0 0
    %119 = vmatpush1.bf16.msra.mxu0 0
    %120 = vmatprep.subr.bf16.mxu0 0
    %121 = vmatpush1.bf16.msra.mxu0 0
    %122 = vmatprep.subr.bf16.mxu0 0
    %123 = vmatpush1.bf16.msra.mxu0 0
    %124 = vmatprep.subr.bf16.mxu0 0
    %125 = vmatpush1.bf16.msra.mxu0 0
    %126 = vmatprep.subr.bf16.mxu0 0
    %127 = vmatpush1.bf16.msra.mxu0 0
    %128 = vmatprep.subr.bf16.mxu0 0
    %129 = vmatpush1.bf16.msra.mxu0 0
    %130 = vmatprep.subr.bf16.mxu0 0
    %131 = vmatpush1.bf16.msra.mxu0 0
    %132 = vmatprep.subr.bf16.mxu0 0
    %133 = vmatpush1.bf16.msra.mxu0 0
    %134 = vmatprep.subr.bf16.mxu0 0
    %135 = vmatpush1.bf16.msra.mxu0 0
    %136 = vmatprep.subr.bf16.mxu0 0
    %137 = vmatpush1.bf16.msra.mxu0 0
    %138 = vmatprep.subr.bf16.mxu0 0
    %139 = vmatpush1.bf16.msra.mxu0 0
    %140 = vmatprep.subr.bf16.mxu0 0
    %141 = vmatpush1.bf16.msra.mxu0 0
    %142 = vmatprep.subr.bf16.mxu0 0
    %143 = vmatpush1.bf16.msra.mxu0 0
    %144 = vmatprep.subr.bf16.mxu0 0
    %145 = vmatpush1.bf16.msra.mxu0 0
    %146 = vmatprep.mubr.bf16.mxu0 0
    %147 = vmatmul.mubr.bf16.gmra.mrb[0].mxu0 %v108
    %v148 = vpop.f32.mrb[0].mxu0
    %v149 = vadd.f32 %v104, %v148
    %v150 = vpop.f32.mrb[0].mxu0
    %v151 = vpop.f32.mrb[0].mxu0
    %v152 = vadd.f32 %v104, %v151
    %v153 = vpop.f32.mrb[0].mxu0
    %154 = vdwg.mxu0
    %v157 = vcombine.high %v149, %v149
    %v159 = vunpack.c.l.s4 1983009808
    %v160 = vunpack.c.0.s8 %v159
    %v161 = vlaneseq
    %v162 = vshrl.u32 %v161, 7
    %v163 = vsub.s32 %v160, %v162
    %v164 = vrot.slane %v149, %v163
    %v166 = vunpack.c.l.s4 1983009808
    %v167 = vunpack.c.0.s8 %v166
    %v168 = vlaneseq
    %v169 = vshrl.u32 %v168, 7
    %v170 = vsub.s32 %v167, %v169
    %v171 = vrot.slane %v157, %v170
    %v172 = vcombine.high %v164, %v164
    %v173 = vcombine.high %v171, %v171
    %v174 = vcombine.high %v152, %v152
    %v176 = vunpack.c.l.s4 1983009808
    %v177 = vunpack.c.0.s8 %v176
    %v178 = vlaneseq
    %v179 = vshrl.u32 %v178, 7
    %v180 = vsub.s32 %v177, %v179
    %v181 = vrot.slane %v152, %v180
    %v183 = vunpack.c.l.s4 1983009808
    %v184 = vunpack.c.0.s8 %v183
    %v185 = vlaneseq
    %v186 = vshrl.u32 %v185, 7
    %v187 = vsub.s32 %v184, %v186
    %v188 = vrot.slane %v174, %v187
    %v189 = vcombine.high %v181, %v181
    %v190 = vcombine.high %v188, %v188
    %v203 = vunpack.c.l.b16 %v42
    %v204 = vunpack.c.l.b16 %v43
    %v205 = vunpack.c.l.b16 %v44
    %v206 = vunpack.c.l.b16 %v45
    %v207 = vpack.c.b16 %v204, %v203
    %v208 = vpack.c.b16 %v206, %v205
    %vm211 = vcmask 261120
    %v213 = vsel %vm211, 0, 0
    %215 = vmatprep.subr.bf16.mxu0 0
    %216 = vmatpush1.bf16.msra.mxu0 %v207
    %217 = vmatprep.subr.bf16.mxu0 0
    %218 = vmatpush1.bf16.msra.mxu0 %v208
    %219 = vmatprep.subr.bf16.mxu0 0
    %220 = vmatpush1.bf16.msra.mxu0 0
    %221 = vmatprep.subr.bf16.mxu0 0
    %222 = vmatpush1.bf16.msra.mxu0 0
    %223 = vmatprep.subr.bf16.mxu0 0
    %224 = vmatpush1.bf16.msra.mxu0 0
    %225 = vmatprep.subr.bf16.mxu0 0
    %226 = vmatpush1.bf16.msra.mxu0 0
    %227 = vmatprep.subr.bf16.mxu0 0
    %228 = vmatpush1.bf16.msra.mxu0 0
    %229 = vmatprep.subr.bf16.mxu0 0
    %230 = vmatpush1.bf16.msra.mxu0 0
    %231 = vmatprep.subr.bf16.mxu0 0
    %232 = vmatpush1.bf16.msra.mxu0 0
    %233 = vmatprep.subr.bf16.mxu0 0
    %234 = vmatpush1.bf16.msra.mxu0 0
    %235 = vmatprep.subr.bf16.mxu0 0
    %236 = vmatpush1.bf16.msra.mxu0 0
    %237 = vmatprep.subr.bf16.mxu0 0
    %238 = vmatpush1.bf16.msra.mxu0 0
    %239 = vmatprep.subr.bf16.mxu0 0
    %240 = vmatpush1.bf16.msra.mxu0 0
    %241 = vmatprep.subr.bf16.mxu0 0
    %242 = vmatpush1.bf16.msra.mxu0 0
    %243 = vmatprep.subr.bf16.mxu0 0
    %244 = vmatpush1.bf16.msra.mxu0 0
    %245 = vmatprep.subr.bf16.mxu0 0
    %246 = vmatpush1.bf16.msra.mxu0 0
    %247 = vmatprep.mubr.bf16.mxu0 0
    %248 = vmatmul.mubr.bf16.gmra.mrb[0].mxu0 %v213
    %v249 = vpop.f32.mrb[0].mxu0
    %v250 = vadd.f32 0.0, %v249
    %v251 = vpop.f32.mrb[0].mxu0
    %v252 = vpop.f32.mrb[0].mxu0
    %v253 = vpop.f32.mrb[0].mxu0
    %254 = vdwg.mxu0
    %v255 = vadd.f32 %v164, %v250
    %v256 = vxor.u32 %v255, 2147483648
    %v257 = vmul.f32 %v256, 1.442695
    %v258 = vpow.pop %v257
    %v259 = vadd.f32 %v258, 1.0
    %v260 = vrcp.pop %v259
    %v261 = vmul.f32 1.0, %v260
    %v262 = vtanh.pop %v255
    %v263 = vmul.f32 %v261, 0.0
    %265 = vrot.lane.b32.xlu0 %v262, 32
    %v266 = vpop.permute.xlu0 %265
    %v268 = vmul.f32 %v261, %v266
    %270 = vrot.lane.b32.xlu0 %v268, 32
    %v271 = vpop.permute.xlu0 %270
    %v273 = vadd.f32 %v263, %v271
    %v274 = vtanh.pop %v273
    %276 = vrot.lane.b32.xlu0 %v274, 32
    %v277 = vpop.permute.xlu0 %276
    %v279 = vmul.f32 %v261, %v277
    %v280 = vpack.c.bf16 %v279, %v279
    %282 = vrot.lane.b32.xlu0 %v280, 64
    %v283 = vpop.permute.xlu0 %282
    %v285 = vsel %vm211, %v283, 0
    %287 = vmatprep.subr.bf16.mxu0 0
    %288 = vmatpush1.bf16.msra.mxu0 %v207
    %289 = vmatprep.subr.bf16.mxu0 0
    %290 = vmatpush1.bf16.msra.mxu0 %v208
    %291 = vmatprep.subr.bf16.mxu0 0
    %292 = vmatpush1.bf16.msra.mxu0 0
    %293 = vmatprep.subr.bf16.mxu0 0
    %294 = vmatpush1.bf16.msra.mxu0 0
    %295 = vmatprep.subr.bf16.mxu0 0
    %296 = vmatpush1.bf16.msra.mxu0 0
    %297 = vmatprep.subr.bf16.mxu0 0
    %298 = vmatpush1.bf16.msra.mxu0 0
    %299 = vmatprep.subr.bf16.mxu0 0
    %300 = vmatpush1.bf16.msra.mxu0 0
    %301 = vmatprep.subr.bf16.mxu0 0
    %302 = vmatpush1.bf16.msra.mxu0 0
    %303 = vmatprep.subr.bf16.mxu0 0
    %304 = vmatpush1.bf16.msra.mxu0 0
    %305 = vmatprep.subr.bf16.mxu0 0
    %306 = vmatpush1.bf16.msra.mxu0 0
    %307 = vmatprep.subr.bf16.mxu0 0
    %308 = vmatpush1.bf16.msra.mxu0 0
    %309 = vmatprep.subr.bf16.mxu0 0
    %310 = vmatpush1.bf16.msra.mxu0 0
    %311 = vmatprep.subr.bf16.mxu0 0
    %312 = vmatpush1.bf16.msra.mxu0 0
    %313 = vmatprep.subr.bf16.mxu0 0
    %314 = vmatpush1.bf16.msra.mxu0 0
    %315 = vmatprep.subr.bf16.mxu0 0
    %316 = vmatpush1.bf16.msra.mxu0 0
    %317 = vmatprep.subr.bf16.mxu0 0
    %318 = vmatpush1.bf16.msra.mxu0 0
    %319 = vmatprep.mubr.bf16.mxu0 0
    %320 = vmatmul.mubr.bf16.gmra.mrb[0].mxu0 %v285
    %v321 = vpop.f32.mrb[0].mxu0
    %v322 = vadd.f32 0.0, %v321
    %v323 = vpop.f32.mrb[0].mxu0
    %v324 = vpop.f32.mrb[0].mxu0
    %v325 = vpop.f32.mrb[0].mxu0
    %326 = vdwg.mxu0
    %v327 = vadd.f32 %v172, %v322
    %v328 = vxor.u32 %v327, 2147483648
    %v329 = vmul.f32 %v328, 1.442695
    %v330 = vpow.pop %v329
    %v331 = vadd.f32 %v330, 1.0
    %v332 = vrcp.pop %v331
    %v333 = vmul.f32 1.0, %v332
    %v334 = vtanh.pop %v327
    %v335 = vmul.f32 %v333, %v273
    %337 = vrot.lane.b32.xlu0 %v334, 32
    %v338 = vpop.permute.xlu0 %337
    %v340 = vmul.f32 %v333, %v338
    %342 = vrot.lane.b32.xlu0 %v340, 32
    %v343 = vpop.permute.xlu0 %342
    %v345 = vadd.f32 %v335, %v343
    %v346 = vtanh.pop %v345
    %348 = vrot.lane.b32.xlu0 %v346, 32
    %v349 = vpop.permute.xlu0 %348
    %v351 = vmul.f32 %v333, %v349
    %v352 = vpack.c.bf16 %v351, %v351
    %354 = vrot.lane.b32.xlu0 %v352, 64
    %v355 = vpop.permute.xlu0 %354
    %v357 = vsel %vm211, %v355, 0
    %359 = vmatprep.subr.bf16.mxu0 0
    %360 = vmatpush1.bf16.msra.mxu0 %v207
    %361 = vmatprep.subr.bf16.mxu0 0
    %362 = vmatpush1.bf16.msra.mxu0 %v208
    %363 = vmatprep.subr.bf16.mxu0 0
    %364 = vmatpush1.bf16.msra.mxu0 0
    %365 = vmatprep.subr.bf16.mxu0 0
    %366 = vmatpush1.bf16.msra.mxu0 0
    %367 = vmatprep.subr.bf16.mxu0 0
    %368 = vmatpush1.bf16.msra.mxu0 0
    %369 = vmatprep.subr.bf16.mxu0 0
    %370 = vmatpush1.bf16.msra.mxu0 0
    %371 = vmatprep.subr.bf16.mxu0 0
    %372 = vmatpush1.bf16.msra.mxu0 0
    %373 = vmatprep.subr.bf16.mxu0 0
    %374 = vmatpush1.bf16.msra.mxu0 0
    %375 = vmatprep.subr.bf16.mxu0 0
    %376 = vmatpush1.bf16.msra.mxu0 0
    %377 = vmatprep.subr.bf16.mxu0 0
    %378 = vmatpush1.bf16.msra.mxu0 0
    %379 = vmatprep.subr.bf16.mxu0 0
    %380 = vmatpush1.bf16.msra.mxu0 0
    %381 = vmatprep.subr.bf16.mxu0 0
    %382 = vmatpush1.bf16.msra.mxu0 0
    %383 = vmatprep.subr.bf16.mxu0 0
    %384 = vmatpush1.bf16.msra.mxu0 0
    %385 = vmatprep.subr.bf16.mxu0 0
    %386 = vmatpush1.bf16.msra.mxu0 0
    %387 = vmatprep.subr.bf16.mxu0 0
    %388 = vmatpush1.bf16.msra.mxu0 0
    %389 = vmatprep.subr.bf16.mxu0 0
    %390 = vmatpush1.bf16.msra.mxu0 0
    %391 = vmatprep.mubr.bf16.mxu0 0
    %392 = vmatmul.mubr.bf16.gmra.mrb[0].mxu0 %v357
    %v393 = vpop.f32.mrb[0].mxu0
    %v394 = vadd.f32 0.0, %v393
    %v395 = vpop.f32.mrb[0].mxu0
    %v396 = vpop.f32.mrb[0].mxu0
    %v397 = vpop.f32.mrb[0].mxu0
    %398 = vdwg.mxu0
    %v399 = vadd.f32 %v171, %v394
    %v400 = vxor.u32 %v399, 2147483648
    %v401 = vmul.f32 %v400, 1.442695
    %v402 = vpow.pop %v401
    %v403 = vadd.f32 %v402, 1.0
    %v404 = vrcp.pop %v403
    %v405 = vmul.f32 1.0, %v404
    %v406 = vtanh.pop %v399
    %v407 = vmul.f32 %v405, %v345
    %409 = vrot.lane.b32.xlu0 %v406, 32
    %v410 = vpop.permute.xlu0 %409
    %v412 = vmul.f32 %v405, %v410
    %414 = vrot.lane.b32.xlu0 %v412, 32
    %v415 = vpop.permute.xlu0 %414
    %v417 = vadd.f32 %v407, %v415
    %v418 = vtanh.pop %v417
    %420 = vrot.lane.b32.xlu0 %v418, 32
    %v421 = vpop.permute.xlu0 %420
    %v423 = vmul.f32 %v405, %v421
    %v424 = vpack.c.bf16 %v423, %v423
    %426 = vrot.lane.b32.xlu0 %v424, 64
    %v427 = vpop.permute.xlu0 %426
    %v429 = vsel %vm211, %v427, 0
    %431 = vmatprep.subr.bf16.mxu0 0
    %432 = vmatpush1.bf16.msra.mxu0 %v207
    %433 = vmatprep.subr.bf16.mxu0 0
    %434 = vmatpush1.bf16.msra.mxu0 %v208
    %435 = vmatprep.subr.bf16.mxu0 0
    %436 = vmatpush1.bf16.msra.mxu0 0
    %437 = vmatprep.subr.bf16.mxu0 0
    %438 = vmatpush1.bf16.msra.mxu0 0
    %439 = vmatprep.subr.bf16.mxu0 0
    %440 = vmatpush1.bf16.msra.mxu0 0
    %441 = vmatprep.subr.bf16.mxu0 0
    %442 = vmatpush1.bf16.msra.mxu0 0
    %443 = vmatprep.subr.bf16.mxu0 0
    %444 = vmatpush1.bf16.msra.mxu0 0
    %445 = vmatprep.subr.bf16.mxu0 0
    %446 = vmatpush1.bf16.msra.mxu0 0
    %447 = vmatprep.subr.bf16.mxu0 0
    %448 = vmatpush1.bf16.msra.mxu0 0
    %449 = vmatprep.subr.bf16.mxu0 0
    %450 = vmatpush1.bf16.msra.mxu0 0
    %451 = vmatprep.subr.bf16.mxu0 0
    %452 = vmatpush1.bf16.msra.mxu0 0
    %453 = vmatprep.subr.bf16.mxu0 0
    %454 = vmatpush1.bf16.msra.mxu0 0
    %455 = vmatprep.subr.bf16.mxu0 0
    %456 = vmatpush1.bf16.msra.mxu0 0
    %457 = vmatprep.subr.bf16.mxu0 0
    %458 = vmatpush1.bf16.msra.mxu0 0
    %459 = vmatprep.subr.bf16.mxu0 0
    %460 = vmatpush1.bf16.msra.mxu0 0
    %461 = vmatprep.subr.bf16.mxu0 0
    %462 = vmatpush1.bf16.msra.mxu0 0
    %463 = vmatprep.mubr.bf16.mxu0 0
    %464 = vmatmul.mubr.bf16.gmra.mrb[0].mxu0 %v429
    %v465 = vpop.f32.mrb[0].mxu0
    %v466 = vadd.f32 0.0, %v465
    %v467 = vpop.f32.mrb[0].mxu0
    %v468 = vpop.f32.mrb[0].mxu0
    %v469 = vpop.f32.mrb[0].mxu0
    %470 = vdwg.mxu0
    %v471 = vadd.f32 %v173, %v466
    %v472 = vxor.u32 %v471, 2147483648
    %v473 = vmul.f32 %v472, 1.442695
    %v474 = vpow.pop %v473
    %v475 = vadd.f32 %v474, 1.0
    %v476 = vrcp.pop %v475
    %v477 = vmul.f32 1.0, %v476
    %v478 = vtanh.pop %v471
    %v479 = vmul.f32 %v477, %v417
    %481 = vrot.lane.b32.xlu0 %v478, 32
    %v482 = vpop.permute.xlu0 %481
    %v484 = vmul.f32 %v477, %v482
    %486 = vrot.lane.b32.xlu0 %v484, 32
    %v487 = vpop.permute.xlu0 %486
    %v489 = vadd.f32 %v479, %v487
    %v490 = vtanh.pop %v489
    %492 = vrot.lane.b32.xlu0 %v490, 32
    %v493 = vpop.permute.xlu0 %492
    %v495 = vmul.f32 %v477, %v493
    %v496 = vpack.c.bf16 %v495, %v495
    %498 = vrot.lane.b32.xlu0 %v496, 64
    %v499 = vpop.permute.xlu0 %498
    %v501 = vsel %vm211, %v499, 0
    %503 = vmatprep.subr.bf16.mxu0 0
    %504 = vmatpush1.bf16.msra.mxu0 %v207
    %505 = vmatprep.subr.bf16.mxu0 0
    %506 = vmatpush1.bf16.msra.mxu0 %v208
    %507 = vmatprep.subr.bf16.mxu0 0
    %508 = vmatpush1.bf16.msra.mxu0 0
    %509 = vmatprep.subr.bf16.mxu0 0
    %510 = vmatpush1.bf16.msra.mxu0 0
    %511 = vmatprep.subr.bf16.mxu0 0
    %512 = vmatpush1.bf16.msra.mxu0 0
    %513 = vmatprep.subr.bf16.mxu0 0
    %514 = vmatpush1.bf16.msra.mxu0 0
    %515 = vmatprep.subr.bf16.mxu0 0
    %516 = vmatpush1.bf16.msra.mxu0 0
    %517 = vmatprep.subr.bf16.mxu0 0
    %518 = vmatpush1.bf16.msra.mxu0 0
    %519 = vmatprep.subr.bf16.mxu0 0
    %520 = vmatpush1.bf16.msra.mxu0 0
    %521 = vmatprep.subr.bf16.mxu0 0
    %522 = vmatpush1.bf16.msra.mxu0 0
    %523 = vmatprep.subr.bf16.mxu0 0
    %524 = vmatpush1.bf16.msra.mxu0 0
    %525 = vmatprep.subr.bf16.mxu0 0
    %526 = vmatpush1.bf16.msra.mxu0 0
    %527 = vmatprep.subr.bf16.mxu0 0
    %528 = vmatpush1.bf16.msra.mxu0 0
    %529 = vmatprep.subr.bf16.mxu0 0
    %530 = vmatpush1.bf16.msra.mxu0 0
    %531 = vmatprep.subr.bf16.mxu0 0
    %532 = vmatpush1.bf16.msra.mxu0 0
    %533 = vmatprep.subr.bf16.mxu0 0
    %534 = vmatpush1.bf16.msra.mxu0 0
    %535 = vmatprep.mubr.bf16.mxu0 0
    %536 = vmatmul.mubr.bf16.gmra.mrb[0].mxu0 %v501
    %v537 = vpop.f32.mrb[0].mxu0
    %v538 = vadd.f32 0.0, %v537
    %v539 = vpop.f32.mrb[0].mxu0
    %v540 = vpop.f32.mrb[0].mxu0
    %v541 = vpop.f32.mrb[0].mxu0
    %542 = vdwg.mxu0
    %v543 = vadd.f32 %v181, %v538
    %v544 = vxor.u32 %v543, 2147483648
    %v545 = vmul.f32 %v544, 1.442695
    %v546 = vpow.pop %v545
    %v547 = vadd.f32 %v546, 1.0
    %v548 = vrcp.pop %v547
    %v549 = vmul.f32 1.0, %v548
    %v550 = vtanh.pop %v543
    %v551 = vmul.f32 %v549, %v489
    %553 = vrot.lane.b32.xlu0 %v550, 32
    %v554 = vpop.permute.xlu0 %553
    %v556 = vmul.f32 %v549, %v554
    %558 = vrot.lane.b32.xlu0 %v556, 32
    %v559 = vpop.permute.xlu0 %558
    %v561 = vadd.f32 %v551, %v559
    %v562 = vtanh.pop %v561
    %564 = vrot.lane.b32.xlu0 %v562, 32
    %v565 = vpop.permute.xlu0 %564
    %v567 = vmul.f32 %v549, %v565
    %v568 = vpack.c.bf16 %v567, %v567
    %570 = vrot.lane.b32.xlu0 %v568, 64
    %v571 = vpop.permute.xlu0 %570
    %v573 = vsel %vm211, %v571, 0
    %575 = vmatprep.subr.bf16.mxu0 0
    %576 = vmatpush1.bf16.msra.mxu0 %v207
    %577 = vmatprep.subr.bf16.mxu0 0
    %578 = vmatpush1.bf16.msra.mxu0 %v208
    %579 = vmatprep.subr.bf16.mxu0 0
    %580 = vmatpush1.bf16.msra.mxu0 0
    %581 = vmatprep.subr.bf16.mxu0 0
    %582 = vmatpush1.bf16.msra.mxu0 0
    %583 = vmatprep.subr.bf16.mxu0 0
    %584 = vmatpush1.bf16.msra.mxu0 0
    %585 = vmatprep.subr.bf16.mxu0 0
    %586 = vmatpush1.bf16.msra.mxu0 0
    %587 = vmatprep.subr.bf16.mxu0 0
    %588 = vmatpush1.bf16.msra.mxu0 0
    %589 = vmatprep.subr.bf16.mxu0 0
    %590 = vmatpush1.bf16.msra.mxu0 0
    %591 = vmatprep.subr.bf16.mxu0 0
    %592 = vmatpush1.bf16.msra.mxu0 0
    %593 = vmatprep.subr.bf16.mxu0 0
    %594 = vmatpush1.bf16.msra.mxu0 0
    %595 = vmatprep.subr.bf16.mxu0 0
    %596 = vmatpush1.bf16.msra.mxu0 0
    %597 = vmatprep.subr.bf16.mxu0 0
    %598 = vmatpush1.bf16.msra.mxu0 0
    %599 = vmatprep.subr.bf16.mxu0 0
    %600 = vmatpush1.bf16.msra.mxu0 0
    %601 = vmatprep.subr.bf16.mxu0 0
    %602 = vmatpush1.bf16.msra.mxu0 0
    %603 = vmatprep.subr.bf16.mxu0 0
    %604 = vmatpush1.bf16.msra.mxu0 0
    %605 = vmatprep.subr.bf16.mxu0 0
    %606 = vmatpush1.bf16.msra.mxu0 0
    %607 = vmatprep.mubr.bf16.mxu0 0
    %608 = vmatmul.mubr.bf16.gmra.mrb[0].mxu0 %v573
    %v609 = vpop.f32.mrb[0].mxu0
    %v610 = vadd.f32 0.0, %v609
    %v611 = vpop.f32.mrb[0].mxu0
    %v612 = vpop.f32.mrb[0].mxu0
    %v613 = vpop.f32.mrb[0].mxu0
    %614 = vdwg.mxu0
    %v615 = vadd.f32 %v189, %v610
    %v616 = vxor.u32 %v615, 2147483648
    %v617 = vmul.f32 %v616, 1.442695
    %v618 = vpow.pop %v617
    %v619 = vadd.f32 %v618, 1.0
    %v620 = vrcp.pop %v619
    %v621 = vmul.f32 1.0, %v620
    %v622 = vtanh.pop %v615
    %v623 = vmul.f32 %v621, %v561
    %625 = vrot.lane.b32.xlu0 %v622, 32
    %v626 = vpop.permute.xlu0 %625
    %v628 = vmul.f32 %v621, %v626
    %630 = vrot.lane.b32.xlu0 %v628, 32
    %v631 = vpop.permute.xlu0 %630
    %v633 = vadd.f32 %v623, %v631
    %v634 = vtanh.pop %v633
    %636 = vrot.lane.b32.xlu0 %v634, 32
    %v637 = vpop.permute.xlu0 %636
    %v639 = vmul.f32 %v621, %v637
    %v640 = vpack.c.bf16 %v639, %v639
    %642 = vrot.lane.b32.xlu0 %v640, 64
    %v643 = vpop.permute.xlu0 %642
    %v645 = vsel %vm211, %v643, 0
    %647 = vmatprep.subr.bf16.mxu0 0
    %648 = vmatpush1.bf16.msra.mxu0 %v207
    %649 = vmatprep.subr.bf16.mxu0 0
    %650 = vmatpush1.bf16.msra.mxu0 %v208
    %651 = vmatprep.subr.bf16.mxu0 0
    %652 = vmatpush1.bf16.msra.mxu0 0
    %653 = vmatprep.subr.bf16.mxu0 0
    %654 = vmatpush1.bf16.msra.mxu0 0
    %655 = vmatprep.subr.bf16.mxu0 0
    %656 = vmatpush1.bf16.msra.mxu0 0
    %657 = vmatprep.subr.bf16.mxu0 0
    %658 = vmatpush1.bf16.msra.mxu0 0
    %659 = vmatprep.subr.bf16.mxu0 0
    %660 = vmatpush1.bf16.msra.mxu0 0
    %661 = vmatprep.subr.bf16.mxu0 0
    %662 = vmatpush1.bf16.msra.mxu0 0
    %663 = vmatprep.subr.bf16.mxu0 0
    %664 = vmatpush1.bf16.msra.mxu0 0
    %665 = vmatprep.subr.bf16.mxu0 0
    %666 = vmatpush1.bf16.msra.mxu0 0
    %667 = vmatprep.subr.bf16.mxu0 0
    %668 = vmatpush1.bf16.msra.mxu0 0
    %669 = vmatprep.subr.bf16.mxu0 0
    %670 = vmatpush1.bf16.msra.mxu0 0
    %671 = vmatprep.subr.bf16.mxu0 0
    %672 = vmatpush1.bf16.msra.mxu0 0
    %673 = vmatprep.subr.bf16.mxu0 0
    %674 = vmatpush1.bf16.msra.mxu0 0
    %675 = vmatprep.subr.bf16.mxu0 0
    %676 = vmatpush1.bf16.msra.mxu0 0
    %677 = vmatprep.subr.bf16.mxu0 0
    %678 = vmatpush1.bf16.msra.mxu0 0
    %679 = vmatprep.mubr.bf16.mxu0 0
    %680 = vmatmul.mubr.bf16.gmra.mrb[0].mxu0 %v645
    %v681 = vpop.f32.mrb[0].mxu0
    %v682 = vadd.f32 0.0, %v681
    %v683 = vpop.f32.mrb[0].mxu0
    %v684 = vpop.f32.mrb[0].mxu0
    %v685 = vpop.f32.mrb[0].mxu0
    %686 = vdwg.mxu0
    %v687 = vadd.f32 %v188, %v682
    %v688 = vxor.u32 %v687, 2147483648
    %v689 = vmul.f32 %v688, 1.442695
    %v690 = vpow.pop %v689
    %v691 = vadd.f32 %v690, 1.0
    %v692 = vrcp.pop %v691
    %v693 = vmul.f32 1.0, %v692
    %v694 = vtanh.pop %v687
    %v695 = vmul.f32 %v693, %v633
    %697 = vrot.lane.b32.xlu0 %v694, 32
    %v698 = vpop.permute.xlu0 %697
    %v700 = vmul.f32 %v693, %v698
    %702 = vrot.lane.b32.xlu0 %v700, 32
    %v703 = vpop.permute.xlu0 %702
    %v705 = vadd.f32 %v695, %v703
    %v706 = vtanh.pop %v705
    %708 = vrot.lane.b32.xlu0 %v706, 32
    %v709 = vpop.permute.xlu0 %708
    %v711 = vmul.f32 %v693, %v709
    %v712 = vpack.c.bf16 %v711, %v711
    %714 = vrot.lane.b32.xlu0 %v712, 64
    %v715 = vpop.permute.xlu0 %714
    %v717 = vsel %vm211, %v715, 0
    %719 = vmatprep.subr.bf16.mxu0 0
    %720 = vmatpush1.bf16.msra.mxu0 %v207
    %721 = vmatprep.subr.bf16.mxu0 0
    %722 = vmatpush1.bf16.msra.mxu0 %v208
    %723 = vmatprep.subr.bf16.mxu0 0
    %724 = vmatpush1.bf16.msra.mxu0 0
    %725 = vmatprep.subr.bf16.mxu0 0
    %726 = vmatpush1.bf16.msra.mxu0 0
    %727 = vmatprep.subr.bf16.mxu0 0
    %728 = vmatpush1.bf16.msra.mxu0 0
    %729 = vmatprep.subr.bf16.mxu0 0
    %730 = vmatpush1.bf16.msra.mxu0 0
    %731 = vmatprep.subr.bf16.mxu0 0
    %732 = vmatpush1.bf16.msra.mxu0 0
    %733 = vmatprep.subr.bf16.mxu0 0
    %734 = vmatpush1.bf16.msra.mxu0 0
    %735 = vmatprep.subr.bf16.mxu0 0
    %736 = vmatpush1.bf16.msra.mxu0 0
    %737 = vmatprep.subr.bf16.mxu0 0
    %738 = vmatpush1.bf16.msra.mxu0 0
    %739 = vmatprep.subr.bf16.mxu0 0
    %740 = vmatpush1.bf16.msra.mxu0 0
    %741 = vmatprep.subr.bf16.mxu0 0
    %742 = vmatpush1.bf16.msra.mxu0 0
    %743 = vmatprep.subr.bf16.mxu0 0
    %744 = vmatpush1.bf16.msra.mxu0 0
    %745 = vmatprep.subr.bf16.mxu0 0
    %746 = vmatpush1.bf16.msra.mxu0 0
    %747 = vmatprep.subr.bf16.mxu0 0
    %748 = vmatpush1.bf16.msra.mxu0 0
    %749 = vmatprep.subr.bf16.mxu0 0
    %750 = vmatpush1.bf16.msra.mxu0 0
    %751 = vmatprep.mubr.bf16.mxu0 0
    %752 = vmatmul.mubr.bf16.gmra.mrb[0].mxu0 %v717
    %v753 = vpop.f32.mrb[0].mxu0
    %v754 = vadd.f32 0.0, %v753
    %v755 = vpop.f32.mrb[0].mxu0
    %v756 = vpop.f32.mrb[0].mxu0
    %v757 = vpop.f32.mrb[0].mxu0
    %758 = vdwg.mxu0
    %v759 = vadd.f32 %v190, %v754
    %v760 = vxor.u32 %v759, 2147483648
    %v761 = vmul.f32 %v760, 1.442695
    %v762 = vpow.pop %v761
    %v763 = vadd.f32 %v762, 1.0
    %v764 = vrcp.pop %v763
    %v765 = vmul.f32 1.0, %v764
    %v766 = vtanh.pop %v759
    %v767 = vmul.f32 %v765, %v705
    %769 = vrot.lane.b32.xlu0 %v766, 32
    %v770 = vpop.permute.xlu0 %769
    %v772 = vmul.f32 %v765, %v770
    %774 = vrot.lane.b32.xlu0 %v772, 32
    %v775 = vpop.permute.xlu0 %774
    %v777 = vadd.f32 %v767, %v775
    %v778 = vtanh.pop %v777
    %780 = vrot.lane.b32.xlu0 %v778, 32
    %v781 = vpop.permute.xlu0 %780
    %v783 = vmul.f32 %v765, %v781
    %v784 = vld [vmem:[%s4] sm:$0xf]
    %v785 = vld [vmem:[%s4 + $0x4] sm:$0xf]
    %v786 = vld [vmem:[%s4 + $0x8] sm:$0xf]
    %v787 = vld [vmem:[%s4 + $0xc] sm:$0xf]
    %v788 = vld [vmem:[#allocation2] sm:$0xf]
    %v789 = vld [vmem:[#allocation2 + $0x4] sm:$0xf]
    %v790 = vld [vmem:[#allocation2 + $0x8] sm:$0xf]
    %v791 = vld [vmem:[#allocation2 + $0xc] sm:$0xf]
    %v792 = vld [vmem:[%s6] sm:$0x1]
    %v794 = vlaneseq
    %v795 = vshrl.u32 %v794, 7
    %v796 = vsub.s32 0, %v795
    %v797 = vrot.slane %v792, %v796
    %v803 = vunpack.c.l.b16 %v784
    %v804 = vunpack.c.l.b16 %v785
    %v805 = vunpack.c.l.b16 %v786
    %v806 = vunpack.c.l.b16 %v787
    %v807 = vpack.c.b16 %v804, %v803
    %v808 = vpack.c.b16 %v806, %v805
    %811 = vmatprep.subr.bf16.mxu0 0
    %812 = vmatpush1.bf16.msra.mxu0 %v807
    %813 = vmatprep.subr.bf16.mxu0 0
    %814 = vmatpush1.bf16.msra.mxu0 %v808
    %815 = vmatprep.subr.bf16.mxu0 0
    %816 = vmatpush1.bf16.msra.mxu0 0
    %817 = vmatprep.subr.bf16.mxu0 0
    %818 = vmatpush1.bf16.msra.mxu0 0
    %819 = vmatprep.subr.bf16.mxu0 0
    %820 = vmatpush1.bf16.msra.mxu0 0
    %821 = vmatprep.subr.bf16.mxu0 0
    %822 = vmatpush1.bf16.msra.mxu0 0
    %823 = vmatprep.subr.bf16.mxu0 0
    %824 = vmatpush1.bf16.msra.mxu0 0
    %825 = vmatprep.subr.bf16.mxu0 0
    %826 = vmatpush1.bf16.msra.mxu0 0
    %827 = vmatprep.subr.bf16.mxu0 0
    %828 = vmatpush1.bf16.msra.mxu0 0
    %829 = vmatprep.subr.bf16.mxu0 0
    %830 = vmatpush1.bf16.msra.mxu0 0
    %831 = vmatprep.subr.bf16.mxu0 0
    %832 = vmatpush1.bf16.msra.mxu0 0
    %833 = vmatprep.subr.bf16.mxu0 0
    %834 = vmatpush1.bf16.msra.mxu0 0
    %835 = vmatprep.subr.bf16.mxu0 0
    %836 = vmatpush1.bf16.msra.mxu0 0
    %837 = vmatprep.subr.bf16.mxu0 0
    %838 = vmatpush1.bf16.msra.mxu0 0
    %839 = vmatprep.subr.bf16.mxu0 0
    %840 = vmatpush1.bf16.msra.mxu0 0
    %841 = vmatprep.subr.bf16.mxu0 0
    %842 = vmatpush1.bf16.msra.mxu0 0
    %843 = vmatprep.mubr.bf16.mxu0 0
    %844 = vmatmul.mubr.bf16.gmra.mrb[0].mxu0 %v285
    %v845 = vpop.f32.mrb[0].mxu0
    %v846 = vadd.f32 %v797, %v845
    %v847 = vpop.f32.mrb[0].mxu0
    %v848 = vpop.f32.mrb[0].mxu0
    %v849 = vpop.f32.mrb[0].mxu0
    %850 = vdwg.mxu0
    %v855 = vunpack.c.l.b16 %v788
    %v856 = vunpack.c.l.b16 %v789
    %v857 = vunpack.c.l.b16 %v790
    %v858 = vunpack.c.l.b16 %v791
    %v859 = vpack.c.b16 %v856, %v855
    %v860 = vpack.c.b16 %v858, %v857
    %863 = vmatprep.subr.bf16.mxu0 0
    %864 = vmatpush1.bf16.msra.mxu0 %v859
    %865 = vmatprep.subr.bf16.mxu0 0
    %866 = vmatpush1.bf16.msra.mxu0 %v860
    %867 = vmatprep.subr.bf16.mxu0 0
    %868 = vmatpush1.bf16.msra.mxu0 0
    %869 = vmatprep.subr.bf16.mxu0 0
    %870 = vmatpush1.bf16.msra.mxu0 0
    %871 = vmatprep.subr.bf16.mxu0 0
    %872 = vmatpush1.bf16.msra.mxu0 0
    %873 = vmatprep.subr.bf16.mxu0 0
    %874 = vmatpush1.bf16.msra.mxu0 0
    %875 = vmatprep.subr.bf16.mxu0 0
    %876 = vmatpush1.bf16.msra.mxu0 0
    %877 = vmatprep.subr.bf16.mxu0 0
    %878 = vmatpush1.bf16.msra.mxu0 0
    %879 = vmatprep.subr.bf16.mxu0 0
    %880 = vmatpush1.bf16.msra.mxu0 0
    %881 = vmatprep.subr.bf16.mxu0 0
    %882 = vmatpush1.bf16.msra.mxu0 0
    %883 = vmatprep.subr.bf16.mxu0 0
    %884 = vmatpush1.bf16.msra.mxu0 0
    %885 = vmatprep.subr.bf16.mxu0 0
    %886 = vmatpush1.bf16.msra.mxu0 0
    %887 = vmatprep.subr.bf16.mxu0 0
    %888 = vmatpush1.bf16.msra.mxu0 0
    %889 = vmatprep.subr.bf16.mxu0 0
    %890 = vmatpush1.bf16.msra.mxu0 0
    %891 = vmatprep.subr.bf16.mxu0 0
    %892 = vmatpush1.bf16.msra.mxu0 0
    %893 = vmatprep.subr.bf16.mxu0 0
    %894 = vmatpush1.bf16.msra.mxu0 0
    %895 = vmatprep.mubr.bf16.mxu0 0
    %896 = vmatmul.mubr.bf16.gmra.mrb[0].mxu0 %v213
    %v897 = vpop.f32.mrb[0].mxu0
    %v898 = vadd.f32 0.0, %v897
    %v899 = vpop.f32.mrb[0].mxu0
    %v900 = vpop.f32.mrb[0].mxu0
    %v901 = vpop.f32.mrb[0].mxu0
    %902 = vdwg.mxu0
    %v903 = vadd.f32 %v846, %v898
    %v904 = vxor.u32 %v903, 2147483648
    %v905 = vmul.f32 %v904, 1.442695
    %v906 = vpow.pop %v905
    %v907 = vadd.f32 %v906, 1.0
    %v908 = vrcp.pop %v907
    %v909 = vmul.f32 1.0, %v908
    %v910 = vtanh.pop %v903
    %v911 = vmul.f32 %v909, 0.0
    %913 = vrot.lane.b32.xlu0 %v910, 32
    %v914 = vpop.permute.xlu0 %913
    %v916 = vmul.f32 %v909, %v914
    %918 = vrot.lane.b32.xlu0 %v916, 32
    %v919 = vpop.permute.xlu0 %918
    %v921 = vadd.f32 %v911, %v919
    %v922 = vtanh.pop %v921
    %924 = vrot.lane.b32.xlu0 %v922, 32
    %v925 = vpop.permute.xlu0 %924
    %v927 = vmul.f32 %v909, %v925
    %928 = vmatprep.subr.bf16.mxu0 0
    %929 = vmatpush1.bf16.msra.mxu0 %v807
    %930 = vmatprep.subr.bf16.mxu0 0
    %931 = vmatpush1.bf16.msra.mxu0 %v808
    %932 = vmatprep.subr.bf16.mxu0 0
    %933 = vmatpush1.bf16.msra.mxu0 0
    %934 = vmatprep.subr.bf16.mxu0 0
    %935 = vmatpush1.bf16.msra.mxu0 0
    %936 = vmatprep.subr.bf16.mxu0 0
    %937 = vmatpush1.bf16.msra.mxu0 0
    %938 = vmatprep.subr.bf16.mxu0 0
    %939 = vmatpush1.bf16.msra.mxu0 0
    %940 = vmatprep.subr.bf16.mxu0 0
    %941 = vmatpush1.bf16.msra.mxu0 0
    %942 = vmatprep.subr.bf16.mxu0 0
    %943 = vmatpush1.bf16.msra.mxu0 0
    %944 = vmatprep.subr.bf16.mxu0 0
    %945 = vmatpush1.bf16.msra.mxu0 0
    %946 = vmatprep.subr.bf16.mxu0 0
    %947 = vmatpush1.bf16.msra.mxu0 0
    %948 = vmatprep.subr.bf16.mxu0 0
    %949 = vmatpush1.bf16.msra.mxu0 0
    %950 = vmatprep.subr.bf16.mxu0 0
    %951 = vmatpush1.bf16.msra.mxu0 0
    %952 = vmatprep.subr.bf16.mxu0 0
    %953 = vmatpush1.bf16.msra.mxu0 0
    %954 = vmatprep.subr.bf16.mxu0 0
    %955 = vmatpush1.bf16.msra.mxu0 0
    %956 = vmatprep.subr.bf16.mxu0 0
    %957 = vmatpush1.bf16.msra.mxu0 0
    %958 = vmatprep.subr.bf16.mxu0 0
    %959 = vmatpush1.bf16.msra.mxu0 0
    %960 = vmatprep.mubr.bf16.mxu0 0
    %961 = vmatmul.mubr.bf16.gmra.mrb[0].mxu0 %v357
    %v962 = vpop.f32.mrb[0].mxu0
    %v963 = vadd.f32 %v797, %v962
    %v964 = vpop.f32.mrb[0].mxu0
    %v965 = vpop.f32.mrb[0].mxu0
    %v966 = vpop.f32.mrb[0].mxu0
    %967 = vdwg.mxu0
    %v968 = vpack.c.bf16 %v927, %v927
    %970 = vrot.lane.b32.xlu0 %v968, 64
    %v971 = vpop.permute.xlu0 %970
    %v973 = vsel %vm211, %v971, 0
    %975 = vmatprep.subr.bf16.mxu0 0
    %976 = vmatpush1.bf16.msra.mxu0 %v859
    %977 = vmatprep.subr.bf16.mxu0 0
    %978 = vmatpush1.bf16.msra.mxu0 %v860
    %979 = vmatprep.subr.bf16.mxu0 0
    %980 = vmatpush1.bf16.msra.mxu0 0
    %981 = vmatprep.subr.bf16.mxu0 0
    %982 = vmatpush1.bf16.msra.mxu0 0
    %983 = vmatprep.subr.bf16.mxu0 0
    %984 = vmatpush1.bf16.msra.mxu0 0
    %985 = vmatprep.subr.bf16.mxu0 0
    %986 = vmatpush1.bf16.msra.mxu0 0
    %987 = vmatprep.subr.bf16.mxu0 0
    %988 = vmatpush1.bf16.msra.mxu0 0
    %989 = vmatprep.subr.bf16.mxu0 0
    %990 = vmatpush1.bf16.msra.mxu0 0
    %991 = vmatprep.subr.bf16.mxu0 0
    %992 = vmatpush1.bf16.msra.mxu0 0
    %993 = vmatprep.subr.bf16.mxu0 0
    %994 = vmatpush1.bf16.msra.mxu0 0
    %995 = vmatprep.subr.bf16.mxu0 0
    %996 = vmatpush1.bf16.msra.mxu0 0
    %997 = vmatprep.subr.bf16.mxu0 0
    %998 = vmatpush1.bf16.msra.mxu0 0
    %999 = vmatprep.subr.bf16.mxu0 0
    %1000 = vmatpush1.bf16.msra.mxu0 0
    %1001 = vmatprep.subr.bf16.mxu0 0
    %1002 = vmatpush1.bf16.msra.mxu0 0
    %1003 = vmatprep.subr.bf16.mxu0 0
    %1004 = vmatpush1.bf16.msra.mxu0 0
    %1005 = vmatprep.subr.bf16.mxu0 0
    %1006 = vmatpush1.bf16.msra.mxu0 0
    %1007 = vmatprep.mubr.bf16.mxu0 0
    %1008 = vmatmul.mubr.bf16.gmra.mrb[0].mxu0 %v973
    %v1009 = vpop.f32.mrb[0].mxu0
    %v1010 = vadd.f32 0.0, %v1009
    %v1011 = vpop.f32.mrb[0].mxu0
    %v1012 = vpop.f32.mrb[0].mxu0
    %v1013 = vpop.f32.mrb[0].mxu0
    %1014 = vdwg.mxu0
    %v1015 = vadd.f32 %v963, %v1010
    %v1016 = vxor.u32 %v1015, 2147483648
    %v1017 = vmul.f32 %v1016, 1.442695
    %v1018 = vpow.pop %v1017
    %v1019 = vadd.f32 %v1018, 1.0
    %v1020 = vrcp.pop %v1019
    %v1021 = vmul.f32 1.0, %v1020
    %v1022 = vtanh.pop %v1015
    %v1023 = vmul.f32 %v1021, %v921
    %1025 = vrot.lane.b32.xlu0 %v1022, 32
    %v1026 = vpop.permute.xlu0 %1025
    %v1028 = vmul.f32 %v1021, %v1026
    %1030 = vrot.lane.b32.xlu0 %v1028, 32
    %v1031 = vpop.permute.xlu0 %1030
    %v1033 = vadd.f32 %v1023, %v1031
    %v1034 = vtanh.pop %v1033
    %1036 = vrot.lane.b32.xlu0 %v1034, 32
    %v1037 = vpop.permute.xlu0 %1036
    %v1039 = vmul.f32 %v1021, %v1037
    %1040 = vmatprep.subr.bf16.mxu0 0
    %1041 = vmatpush1.bf16.msra.mxu0 %v807
    %1042 = vmatprep.subr.bf16.mxu0 0
    %1043 = vmatpush1.bf16.msra.mxu0 %v808
    %1044 = vmatprep.subr.bf16.mxu0 0
    %1045 = vmatpush1.bf16.msra.mxu0 0
    %1046 = vmatprep.subr.bf16.mxu0 0
    %1047 = vmatpush1.bf16.msra.mxu0 0
    %1048 = vmatprep.subr.bf16.mxu0 0
    %1049 = vmatpush1.bf16.msra.mxu0 0
    %1050 = vmatprep.subr.bf16.mxu0 0
    %1051 = vmatpush1.bf16.msra.mxu0 0
    %1052 = vmatprep.subr.bf16.mxu0 0
    %1053 = vmatpush1.bf16.msra.mxu0 0
    %1054 = vmatprep.subr.bf16.mxu0 0
    %1055 = vmatpush1.bf16.msra.mxu0 0
    %1056 = vmatprep.subr.bf16.mxu0 0
    %1057 = vmatpush1.bf16.msra.mxu0 0
    %1058 = vmatprep.subr.bf16.mxu0 0
    %1059 = vmatpush1.bf16.msra.mxu0 0
    %1060 = vmatprep.subr.bf16.mxu0 0
    %1061 = vmatpush1.bf16.msra.mxu0 0
    %1062 = vmatprep.subr.bf16.mxu0 0
    %1063 = vmatpush1.bf16.msra.mxu0 0
    %1064 = vmatprep.subr.bf16.mxu0 0
    %1065 = vmatpush1.bf16.msra.mxu0 0
    %1066 = vmatprep.subr.bf16.mxu0 0
    %1067 = vmatpush1.bf16.msra.mxu0 0
    %1068 = vmatprep.subr.bf16.mxu0 0
    %1069 = vmatpush1.bf16.msra.mxu0 0
    %1070 = vmatprep.subr.bf16.mxu0 0
    %1071 = vmatpush1.bf16.msra.mxu0 0
    %1072 = vmatprep.mubr.bf16.mxu0 0
    %1073 = vmatmul.mubr.bf16.gmra.mrb[0].mxu0 %v429
    %v1074 = vpop.f32.mrb[0].mxu0
    %v1075 = vadd.f32 %v797, %v1074
    %v1076 = vpop.f32.mrb[0].mxu0
    %v1077 = vpop.f32.mrb[0].mxu0
    %v1078 = vpop.f32.mrb[0].mxu0
    %1079 = vdwg.mxu0
    %v1080 = vpack.c.bf16 %v1039, %v1039
    %1082 = vrot.lane.b32.xlu0 %v1080, 64
    %v1083 = vpop.permute.xlu0 %1082
    %v1085 = vsel %vm211, %v1083, 0
    %1087 = vmatprep.subr.bf16.mxu0 0
    %1088 = vmatpush1.bf16.msra.mxu0 %v859
    %1089 = vmatprep.subr.bf16.mxu0 0
    %1090 = vmatpush1.bf16.msra.mxu0 %v860
    %1091 = vmatprep.subr.bf16.mxu0 0
    %1092 = vmatpush1.bf16.msra.mxu0 0
    %1093 = vmatprep.subr.bf16.mxu0 0
    %1094 = vmatpush1.bf16.msra.mxu0 0
    %1095 = vmatprep.subr.bf16.mxu0 0
    %1096 = vmatpush1.bf16.msra.mxu0 0
    %1097 = vmatprep.subr.bf16.mxu0 0
    %1098 = vmatpush1.bf16.msra.mxu0 0
    %1099 = vmatprep.subr.bf16.mxu0 0
    %1100 = vmatpush1.bf16.msra.mxu0 0
    %1101 = vmatprep.subr.bf16.mxu0 0
    %1102 = vmatpush1.bf16.msra.mxu0 0
    %1103 = vmatprep.subr.bf16.mxu0 0
    %1104 = vmatpush1.bf16.msra.mxu0 0
    %1105 = vmatprep.subr.bf16.mxu0 0
    %1106 = vmatpush1.bf16.msra.mxu0 0
    %1107 = vmatprep.subr.bf16.mxu0 0
    %1108 = vmatpush1.bf16.msra.mxu0 0
    %1109 = vmatprep.subr.bf16.mxu0 0
    %1110 = vmatpush1.bf16.msra.mxu0 0
    %1111 = vmatprep.subr.bf16.mxu0 0
    %1112 = vmatpush1.bf16.msra.mxu0 0
    %1113 = vmatprep.subr.bf16.mxu0 0
    %1114 = vmatpush1.bf16.msra.mxu0 0
    %1115 = vmatprep.subr.bf16.mxu0 0
    %1116 = vmatpush1.bf16.msra.mxu0 0
    %1117 = vmatprep.subr.bf16.mxu0 0
    %1118 = vmatpush1.bf16.msra.mxu0 0
    %1119 = vmatprep.mubr.bf16.mxu0 0
    %1120 = vmatmul.mubr.bf16.gmra.mrb[0].mxu0 %v1085
    %v1121 = vpop.f32.mrb[0].mxu0
    %v1122 = vadd.f32 0.0, %v1121
    %v1123 = vpop.f32.mrb[0].mxu0
    %v1124 = vpop.f32.mrb[0].mxu0
    %v1125 = vpop.f32.mrb[0].mxu0
    %1126 = vdwg.mxu0
    %v1127 = vadd.f32 %v1075, %v1122
    %v1128 = vxor.u32 %v1127, 2147483648
    %v1129 = vmul.f32 %v1128, 1.442695
    %v1130 = vpow.pop %v1129
    %v1131 = vadd.f32 %v1130, 1.0
    %v1132 = vrcp.pop %v1131
    %v1133 = vmul.f32 1.0, %v1132
    %v1134 = vtanh.pop %v1127
    %v1135 = vmul.f32 %v1133, %v1033
    %1137 = vrot.lane.b32.xlu0 %v1134, 32
    %v1138 = vpop.permute.xlu0 %1137
    %v1140 = vmul.f32 %v1133, %v1138
    %1142 = vrot.lane.b32.xlu0 %v1140, 32
    %v1143 = vpop.permute.xlu0 %1142
    %v1145 = vadd.f32 %v1135, %v1143
    %v1146 = vtanh.pop %v1145
    %1148 = vrot.lane.b32.xlu0 %v1146, 32
    %v1149 = vpop.permute.xlu0 %1148
    %v1151 = vmul.f32 %v1133, %v1149
    %1152 = vmatprep.subr.bf16.mxu0 0
    %1153 = vmatpush1.bf16.msra.mxu0 %v807
    %1154 = vmatprep.subr.bf16.mxu0 0
    %1155 = vmatpush1.bf16.msra.mxu0 %v808
    %1156 = vmatprep.subr.bf16.mxu0 0
    %1157 = vmatpush1.bf16.msra.mxu0 0
    %1158 = vmatprep.subr.bf16.mxu0 0
    %1159 = vmatpush1.bf16.msra.mxu0 0
    %1160 = vmatprep.subr.bf16.mxu0 0
    %1161 = vmatpush1.bf16.msra.mxu0 0
    %1162 = vmatprep.subr.bf16.mxu0 0
    %1163 = vmatpush1.bf16.msra.mxu0 0
    %1164 = vmatprep.subr.bf16.mxu0 0
    %1165 = vmatpush1.bf16.msra.mxu0 0
    %1166 = vmatprep.subr.bf16.mxu0 0
    %1167 = vmatpush1.bf16.msra.mxu0 0
    %1168 = vmatprep.subr.bf16.mxu0 0
    %1169 = vmatpush1.bf16.msra.mxu0 0
    %1170 = vmatprep.subr.bf16.mxu0 0
    %1171 = vmatpush1.bf16.msra.mxu0 0
    %1172 = vmatprep.subr.bf16.mxu0 0
    %1173 = vmatpush1.bf16.msra.mxu0 0
    %1174 = vmatprep.subr.bf16.mxu0 0
    %1175 = vmatpush1.bf16.msra.mxu0 0
    %1176 = vmatprep.subr.bf16.mxu0 0
    %1177 = vmatpush1.bf16.msra.mxu0 0
    %1178 = vmatprep.subr.bf16.mxu0 0
    %1179 = vmatpush1.bf16.msra.mxu0 0
    %1180 = vmatprep.subr.bf16.mxu0 0
    %1181 = vmatpush1.bf16.msra.mxu0 0
    %1182 = vmatprep.subr.bf16.mxu0 0
    %1183 = vmatpush1.bf16.msra.mxu0 0
    %1184 = vmatprep.mubr.bf16.mxu0 0
    %1185 = vmatmul.mubr.bf16.gmra.mrb[0].mxu0 %v501
    %v1186 = vpop.f32.mrb[0].mxu0
    %v1187 = vadd.f32 %v797, %v1186
    %v1188 = vpop.f32.mrb[0].mxu0
    %v1189 = vpop.f32.mrb[0].mxu0
    %v1190 = vpop.f32.mrb[0].mxu0
    %1191 = vdwg.mxu0
    %v1192 = vpack.c.bf16 %v1151, %v1151
    %1194 = vrot.lane.b32.xlu0 %v1192, 64
    %v1195 = vpop.permute.xlu0 %1194
    %v1197 = vsel %vm211, %v1195, 0
    %1199 = vmatprep.subr.bf16.mxu0 0
    %1200 = vmatpush1.bf16.msra.mxu0 %v859
    %1201 = vmatprep.subr.bf16.mxu0 0
    %1202 = vmatpush1.bf16.msra.mxu0 %v860
    %1203 = vmatprep.subr.bf16.mxu0 0
    %1204 = vmatpush1.bf16.msra.mxu0 0
    %1205 = vmatprep.subr.bf16.mxu0 0
    %1206 = vmatpush1.bf16.msra.mxu0 0
    %1207 = vmatprep.subr.bf16.mxu0 0
    %1208 = vmatpush1.bf16.msra.mxu0 0
    %1209 = vmatprep.subr.bf16.mxu0 0
    %1210 = vmatpush1.bf16.msra.mxu0 0
    %1211 = vmatprep.subr.bf16.mxu0 0
    %1212 = vmatpush1.bf16.msra.mxu0 0
    %1213 = vmatprep.subr.bf16.mxu0 0
    %1214 = vmatpush1.bf16.msra.mxu0 0
    %1215 = vmatprep.subr.bf16.mxu0 0
    %1216 = vmatpush1.bf16.msra.mxu0 0
    %1217 = vmatprep.subr.bf16.mxu0 0
    %1218 = vmatpush1.bf16.msra.mxu0 0
    %1219 = vmatprep.subr.bf16.mxu0 0
    %1220 = vmatpush1.bf16.msra.mxu0 0
    %1221 = vmatprep.subr.bf16.mxu0 0
    %1222 = vmatpush1.bf16.msra.mxu0 0
    %1223 = vmatprep.subr.bf16.mxu0 0
    %1224 = vmatpush1.bf16.msra.mxu0 0
    %1225 = vmatprep.subr.bf16.mxu0 0
    %1226 = vmatpush1.bf16.msra.mxu0 0
    %1227 = vmatprep.subr.bf16.mxu0 0
    %1228 = vmatpush1.bf16.msra.mxu0 0
    %1229 = vmatprep.subr.bf16.mxu0 0
    %1230 = vmatpush1.bf16.msra.mxu0 0
    %1231 = vmatprep.mubr.bf16.mxu0 0
    %1232 = vmatmul.mubr.bf16.gmra.mrb[0].mxu0 %v1197
    %v1233 = vpop.f32.mrb[0].mxu0
    %v1234 = vadd.f32 0.0, %v1233
    %v1235 = vpop.f32.mrb[0].mxu0
    %v1236 = vpop.f32.mrb[0].mxu0
    %v1237 = vpop.f32.mrb[0].mxu0
    %1238 = vdwg.mxu0
    %v1239 = vadd.f32 %v1187, %v1234
    %v1240 = vxor.u32 %v1239, 2147483648
    %v1241 = vmul.f32 %v1240, 1.442695
    %v1242 = vpow.pop %v1241
    %v1243 = vadd.f32 %v1242, 1.0
    %v1244 = vrcp.pop %v1243
    %v1245 = vmul.f32 1.0, %v1244
    %v1246 = vtanh.pop %v1239
    %v1247 = vmul.f32 %v1245, %v1145
    %1249 = vrot.lane.b32.xlu0 %v1246, 32
    %v1250 = vpop.permute.xlu0 %1249
    %v1252 = vmul.f32 %v1245, %v1250
    %1254 = vrot.lane.b32.xlu0 %v1252, 32
    %v1255 = vpop.permute.xlu0 %1254
    %v1257 = vadd.f32 %v1247, %v1255
    %v1258 = vtanh.pop %v1257
    %1260 = vrot.lane.b32.xlu0 %v1258, 32
    %v1261 = vpop.permute.xlu0 %1260
    %v1263 = vmul.f32 %v1245, %v1261
    %1264 = vmatprep.subr.bf16.mxu0 0
    %1265 = vmatpush1.bf16.msra.mxu0 %v807
    %1266 = vmatprep.subr.bf16.mxu0 0
    %1267 = vmatpush1.bf16.msra.mxu0 %v808
    %1268 = vmatprep.subr.bf16.mxu0 0
    %1269 = vmatpush1.bf16.msra.mxu0 0
    %1270 = vmatprep.subr.bf16.mxu0 0
    %1271 = vmatpush1.bf16.msra.mxu0 0
    %1272 = vmatprep.subr.bf16.mxu0 0
    %1273 = vmatpush1.bf16.msra.mxu0 0
    %1274 = vmatprep.subr.bf16.mxu0 0
    %1275 = vmatpush1.bf16.msra.mxu0 0
    %1276 = vmatprep.subr.bf16.mxu0 0
    %1277 = vmatpush1.bf16.msra.mxu0 0
    %1278 = vmatprep.subr.bf16.mxu0 0
    %1279 = vmatpush1.bf16.msra.mxu0 0
    %1280 = vmatprep.subr.bf16.mxu0 0
    %1281 = vmatpush1.bf16.msra.mxu0 0
    %1282 = vmatprep.subr.bf16.mxu0 0
    %1283 = vmatpush1.bf16.msra.mxu0 0
    %1284 = vmatprep.subr.bf16.mxu0 0
    %1285 = vmatpush1.bf16.msra.mxu0 0
    %1286 = vmatprep.subr.bf16.mxu0 0
    %1287 = vmatpush1.bf16.msra.mxu0 0
    %1288 = vmatprep.subr.bf16.mxu0 0
    %1289 = vmatpush1.bf16.msra.mxu0 0
    %1290 = vmatprep.subr.bf16.mxu0 0
    %1291 = vmatpush1.bf16.msra.mxu0 0
    %1292 = vmatprep.subr.bf16.mxu0 0
    %1293 = vmatpush1.bf16.msra.mxu0 0
    %1294 = vmatprep.subr.bf16.mxu0 0
    %1295 = vmatpush1.bf16.msra.mxu0 0
    %1296 = vmatprep.mubr.bf16.mxu0 0
    %1297 = vmatmul.mubr.bf16.gmra.mrb[0].mxu0 %v573
    %v1298 = vpop.f32.mrb[0].mxu0
    %v1299 = vadd.f32 %v797, %v1298
    %v1300 = vpop.f32.mrb[0].mxu0
    %v1301 = vpop.f32.mrb[0].mxu0
    %v1302 = vpop.f32.mrb[0].mxu0
    %1303 = vdwg.mxu0
    %v1304 = vpack.c.bf16 %v1263, %v1263
    %1306 = vrot.lane.b32.xlu0 %v1304, 64
    %v1307 = vpop.permute.xlu0 %1306
    %v1309 = vsel %vm211, %v1307, 0
    %1311 = vmatprep.subr.bf16.mxu0 0
    %1312 = vmatpush1.bf16.msra.mxu0 %v859
    %1313 = vmatprep.subr.bf16.mxu0 0
    %1314 = vmatpush1.bf16.msra.mxu0 %v860
    %1315 = vmatprep.subr.bf16.mxu0 0
    %1316 = vmatpush1.bf16.msra.mxu0 0
    %1317 = vmatprep.subr.bf16.mxu0 0
    %1318 = vmatpush1.bf16.msra.mxu0 0
    %1319 = vmatprep.subr.bf16.mxu0 0
    %1320 = vmatpush1.bf16.msra.mxu0 0
    %1321 = vmatprep.subr.bf16.mxu0 0
    %1322 = vmatpush1.bf16.msra.mxu0 0
    %1323 = vmatprep.subr.bf16.mxu0 0
    %1324 = vmatpush1.bf16.msra.mxu0 0
    %1325 = vmatprep.subr.bf16.mxu0 0
    %1326 = vmatpush1.bf16.msra.mxu0 0
    %1327 = vmatprep.subr.bf16.mxu0 0
    %1328 = vmatpush1.bf16.msra.mxu0 0
    %1329 = vmatprep.subr.bf16.mxu0 0
    %1330 = vmatpush1.bf16.msra.mxu0 0
    %1331 = vmatprep.subr.bf16.mxu0 0
    %1332 = vmatpush1.bf16.msra.mxu0 0
    %1333 = vmatprep.subr.bf16.mxu0 0
    %1334 = vmatpush1.bf16.msra.mxu0 0
    %1335 = vmatprep.subr.bf16.mxu0 0
    %1336 = vmatpush1.bf16.msra.mxu0 0
    %1337 = vmatprep.subr.bf16.mxu0 0
    %1338 = vmatpush1.bf16.msra.mxu0 0
    %1339 = vmatprep.subr.bf16.mxu0 0
    %1340 = vmatpush1.bf16.msra.mxu0 0
    %1341 = vmatprep.subr.bf16.mxu0 0
    %1342 = vmatpush1.bf16.msra.mxu0 0
    %1343 = vmatprep.mubr.bf16.mxu0 0
    %1344 = vmatmul.mubr.bf16.gmra.mrb[0].mxu0 %v1309
    %v1345 = vpop.f32.mrb[0].mxu0
    %v1346 = vadd.f32 0.0, %v1345
    %v1347 = vpop.f32.mrb[0].mxu0
    %v1348 = vpop.f32.mrb[0].mxu0
    %v1349 = vpop.f32.mrb[0].mxu0
    %1350 = vdwg.mxu0
    %v1351 = vadd.f32 %v1299, %v1346
    %v1352 = vxor.u32 %v1351, 2147483648
    %v1353 = vmul.f32 %v1352, 1.442695
    %v1354 = vpow.pop %v1353
    %v1355 = vadd.f32 %v1354, 1.0
    %v1356 = vrcp.pop %v1355
    %v1357 = vmul.f32 1.0, %v1356
    %v1358 = vtanh.pop %v1351
    %v1359 = vmul.f32 %v1357, %v1257
    %1361 = vrot.lane.b32.xlu0 %v1358, 32
    %v1362 = vpop.permute.xlu0 %1361
    %v1364 = vmul.f32 %v1357, %v1362
    %1366 = vrot.lane.b32.xlu0 %v1364, 32
    %v1367 = vpop.permute.xlu0 %1366
    %v1369 = vadd.f32 %v1359, %v1367
    %v1370 = vtanh.pop %v1369
    %1372 = vrot.lane.b32.xlu0 %v1370, 32
    %v1373 = vpop.permute.xlu0 %1372
    %v1375 = vmul.f32 %v1357, %v1373
    %1376 = vmatprep.subr.bf16.mxu0 0
    %1377 = vmatpush1.bf16.msra.mxu0 %v807
    %1378 = vmatprep.subr.bf16.mxu0 0
    %1379 = vmatpush1.bf16.msra.mxu0 %v808
    %1380 = vmatprep.subr.bf16.mxu0 0
    %1381 = vmatpush1.bf16.msra.mxu0 0
    %1382 = vmatprep.subr.bf16.mxu0 0
    %1383 = vmatpush1.bf16.msra.mxu0 0
    %1384 = vmatprep.subr.bf16.mxu0 0
    %1385 = vmatpush1.bf16.msra.mxu0 0
    %1386 = vmatprep.subr.bf16.mxu0 0
    %1387 = vmatpush1.bf16.msra.mxu0 0
    %1388 = vmatprep.subr.bf16.mxu0 0
    %1389 = vmatpush1.bf16.msra.mxu0 0
    %1390 = vmatprep.subr.bf16.mxu0 0
    %1391 = vmatpush1.bf16.msra.mxu0 0
    %1392 = vmatprep.subr.bf16.mxu0 0
    %1393 = vmatpush1.bf16.msra.mxu0 0
    %1394 = vmatprep.subr.bf16.mxu0 0
    %1395 = vmatpush1.bf16.msra.mxu0 0
    %1396 = vmatprep.subr.bf16.mxu0 0
    %1397 = vmatpush1.bf16.msra.mxu0 0
    %1398 = vmatprep.subr.bf16.mxu0 0
    %1399 = vmatpush1.bf16.msra.mxu0 0
    %1400 = vmatprep.subr.bf16.mxu0 0
    %1401 = vmatpush1.bf16.msra.mxu0 0
    %1402 = vmatprep.subr.bf16.mxu0 0
    %1403 = vmatpush1.bf16.msra.mxu0 0
    %1404 = vmatprep.subr.bf16.mxu0 0
    %1405 = vmatpush1.bf16.msra.mxu0 0
    %1406 = vmatprep.subr.bf16.mxu0 0
    %1407 = vmatpush1.bf16.msra.mxu0 0
    %1408 = vmatprep.mubr.bf16.mxu0 0
    %1409 = vmatmul.mubr.bf16.gmra.mrb[0].mxu0 %v645
    %v1410 = vpop.f32.mrb[0].mxu0
    %v1411 = vadd.f32 %v797, %v1410
    %v1412 = vpop.f32.mrb[0].mxu0
    %v1413 = vpop.f32.mrb[0].mxu0
    %v1414 = vpop.f32.mrb[0].mxu0
    %1415 = vdwg.mxu0
    %v1416 = vpack.c.bf16 %v1375, %v1375
    %1418 = vrot.lane.b32.xlu0 %v1416, 64
    %v1419 = vpop.permute.xlu0 %1418
    %v1421 = vsel %vm211, %v1419, 0
    %1423 = vmatprep.subr.bf16.mxu0 0
    %1424 = vmatpush1.bf16.msra.mxu0 %v859
    %1425 = vmatprep.subr.bf16.mxu0 0
    %1426 = vmatpush1.bf16.msra.mxu0 %v860
    %1427 = vmatprep.subr.bf16.mxu0 0
    %1428 = vmatpush1.bf16.msra.mxu0 0
    %1429 = vmatprep.subr.bf16.mxu0 0
    %1430 = vmatpush1.bf16.msra.mxu0 0
    %1431 = vmatprep.subr.bf16.mxu0 0
    %1432 = vmatpush1.bf16.msra.mxu0 0
    %1433 = vmatprep.subr.bf16.mxu0 0
    %1434 = vmatpush1.bf16.msra.mxu0 0
    %1435 = vmatprep.subr.bf16.mxu0 0
    %1436 = vmatpush1.bf16.msra.mxu0 0
    %1437 = vmatprep.subr.bf16.mxu0 0
    %1438 = vmatpush1.bf16.msra.mxu0 0
    %1439 = vmatprep.subr.bf16.mxu0 0
    %1440 = vmatpush1.bf16.msra.mxu0 0
    %1441 = vmatprep.subr.bf16.mxu0 0
    %1442 = vmatpush1.bf16.msra.mxu0 0
    %1443 = vmatprep.subr.bf16.mxu0 0
    %1444 = vmatpush1.bf16.msra.mxu0 0
    %1445 = vmatprep.subr.bf16.mxu0 0
    %1446 = vmatpush1.bf16.msra.mxu0 0
    %1447 = vmatprep.subr.bf16.mxu0 0
    %1448 = vmatpush1.bf16.msra.mxu0 0
    %1449 = vmatprep.subr.bf16.mxu0 0
    %1450 = vmatpush1.bf16.msra.mxu0 0
    %1451 = vmatprep.subr.bf16.mxu0 0
    %1452 = vmatpush1.bf16.msra.mxu0 0
    %1453 = vmatprep.subr.bf16.mxu0 0
    %1454 = vmatpush1.bf16.msra.mxu0 0
    %1455 = vmatprep.mubr.bf16.mxu0 0
    %1456 = vmatmul.mubr.bf16.gmra.mrb[0].mxu0 %v1421
    %v1457 = vpop.f32.mrb[0].mxu0
    %v1458 = vadd.f32 0.0, %v1457
    %v1459 = vpop.f32.mrb[0].mxu0
    %v1460 = vpop.f32.mrb[0].mxu0
    %v1461 = vpop.f32.mrb[0].mxu0
    %1462 = vdwg.mxu0
    %v1463 = vadd.f32 %v1411, %v1458
    %v1464 = vxor.u32 %v1463, 2147483648
    %v1465 = vmul.f32 %v1464, 1.442695
    %v1466 = vpow.pop %v1465
    %v1467 = vadd.f32 %v1466, 1.0
    %v1468 = vrcp.pop %v1467
    %v1469 = vmul.f32 1.0, %v1468
    %v1470 = vtanh.pop %v1463
    %v1471 = vmul.f32 %v1469, %v1369
    %1473 = vrot.lane.b32.xlu0 %v1470, 32
    %v1474 = vpop.permute.xlu0 %1473
    %v1476 = vmul.f32 %v1469, %v1474
    %1478 = vrot.lane.b32.xlu0 %v1476, 32
    %v1479 = vpop.permute.xlu0 %1478
    %v1481 = vadd.f32 %v1471, %v1479
    %v1482 = vtanh.pop %v1481
    %1484 = vrot.lane.b32.xlu0 %v1482, 32
    %v1485 = vpop.permute.xlu0 %1484
    %v1487 = vmul.f32 %v1469, %v1485
    %1488 = vmatprep.subr.bf16.mxu0 0
    %1489 = vmatpush1.bf16.msra.mxu0 %v807
    %1490 = vmatprep.subr.bf16.mxu0 0
    %1491 = vmatpush1.bf16.msra.mxu0 %v808
    %1492 = vmatprep.subr.bf16.mxu0 0
    %1493 = vmatpush1.bf16.msra.mxu0 0
    %1494 = vmatprep.subr.bf16.mxu0 0
    %1495 = vmatpush1.bf16.msra.mxu0 0
    %1496 = vmatprep.subr.bf16.mxu0 0
    %1497 = vmatpush1.bf16.msra.mxu0 0
    %1498 = vmatprep.subr.bf16.mxu0 0
    %1499 = vmatpush1.bf16.msra.mxu0 0
    %1500 = vmatprep.subr.bf16.mxu0 0
    %1501 = vmatpush1.bf16.msra.mxu0 0
    %1502 = vmatprep.subr.bf16.mxu0 0
    %1503 = vmatpush1.bf16.msra.mxu0 0
    %1504 = vmatprep.subr.bf16.mxu0 0
    %1505 = vmatpush1.bf16.msra.mxu0 0
    %1506 = vmatprep.subr.bf16.mxu0 0
    %1507 = vmatpush1.bf16.msra.mxu0 0
    %1508 = vmatprep.subr.bf16.mxu0 0
    %1509 = vmatpush1.bf16.msra.mxu0 0
    %1510 = vmatprep.subr.bf16.mxu0 0
    %1511 = vmatpush1.bf16.msra.mxu0 0
    %1512 = vmatprep.subr.bf16.mxu0 0
    %1513 = vmatpush1.bf16.msra.mxu0 0
    %1514 = vmatprep.subr.bf16.mxu0 0
    %1515 = vmatpush1.bf16.msra.mxu0 0
    %1516 = vmatprep.subr.bf16.mxu0 0
    %1517 = vmatpush1.bf16.msra.mxu0 0
    %1518 = vmatprep.subr.bf16.mxu0 0
    %1519 = vmatpush1.bf16.msra.mxu0 0
    %1520 = vmatprep.mubr.bf16.mxu0 0
    %1521 = vmatmul.mubr.bf16.gmra.mrb[0].mxu0 %v717
    %v1522 = vpop.f32.mrb[0].mxu0
    %v1523 = vadd.f32 %v797, %v1522
    %v1524 = vpop.f32.mrb[0].mxu0
    %v1525 = vpop.f32.mrb[0].mxu0
    %v1526 = vpop.f32.mrb[0].mxu0
    %1527 = vdwg.mxu0
    %v1528 = vpack.c.bf16 %v1487, %v1487
    %1530 = vrot.lane.b32.xlu0 %v1528, 64
    %v1531 = vpop.permute.xlu0 %1530
    %v1533 = vsel %vm211, %v1531, 0
    %1535 = vmatprep.subr.bf16.mxu0 0
    %1536 = vmatpush1.bf16.msra.mxu0 %v859
    %1537 = vmatprep.subr.bf16.mxu0 0
    %1538 = vmatpush1.bf16.msra.mxu0 %v860
    %1539 = vmatprep.subr.bf16.mxu0 0
    %1540 = vmatpush1.bf16.msra.mxu0 0
    %1541 = vmatprep.subr.bf16.mxu0 0
    %1542 = vmatpush1.bf16.msra.mxu0 0
    %1543 = vmatprep.subr.bf16.mxu0 0
    %1544 = vmatpush1.bf16.msra.mxu0 0
    %1545 = vmatprep.subr.bf16.mxu0 0
    %1546 = vmatpush1.bf16.msra.mxu0 0
    %1547 = vmatprep.subr.bf16.mxu0 0
    %1548 = vmatpush1.bf16.msra.mxu0 0
    %1549 = vmatprep.subr.bf16.mxu0 0
    %1550 = vmatpush1.bf16.msra.mxu0 0
    %1551 = vmatprep.subr.bf16.mxu0 0
    %1552 = vmatpush1.bf16.msra.mxu0 0
    %1553 = vmatprep.subr.bf16.mxu0 0
    %1554 = vmatpush1.bf16.msra.mxu0 0
    %1555 = vmatprep.subr.bf16.mxu0 0
    %1556 = vmatpush1.bf16.msra.mxu0 0
    %1557 = vmatprep.subr.bf16.mxu0 0
    %1558 = vmatpush1.bf16.msra.mxu0 0
    %1559 = vmatprep.subr.bf16.mxu0 0
    %1560 = vmatpush1.bf16.msra.mxu0 0
    %1561 = vmatprep.subr.bf16.mxu0 0
    %1562 = vmatpush1.bf16.msra.mxu0 0
    %1563 = vmatprep.subr.bf16.mxu0 0
    %1564 = vmatpush1.bf16.msra.mxu0 0
    %1565 = vmatprep.subr.bf16.mxu0 0
    %1566 = vmatpush1.bf16.msra.mxu0 0
    %1567 = vmatprep.mubr.bf16.mxu0 0
    %1568 = vmatmul.mubr.bf16.gmra.mrb[0].mxu0 %v1533
    %v1569 = vpop.f32.mrb[0].mxu0
    %v1570 = vadd.f32 0.0, %v1569
    %v1571 = vpop.f32.mrb[0].mxu0
    %v1572 = vpop.f32.mrb[0].mxu0
    %v1573 = vpop.f32.mrb[0].mxu0
    %1574 = vdwg.mxu0
    %v1575 = vadd.f32 %v1523, %v1570
    %v1576 = vxor.u32 %v1575, 2147483648
    %v1577 = vmul.f32 %v1576, 1.442695
    %v1578 = vpow.pop %v1577
    %v1579 = vadd.f32 %v1578, 1.0
    %v1580 = vrcp.pop %v1579
    %v1581 = vmul.f32 1.0, %v1580
    %v1582 = vtanh.pop %v1575
    %v1583 = vmul.f32 %v1581, %v1481
    %1585 = vrot.lane.b32.xlu0 %v1582, 32
    %v1586 = vpop.permute.xlu0 %1585
    %v1588 = vmul.f32 %v1581, %v1586
    %1590 = vrot.lane.b32.xlu0 %v1588, 32
    %v1591 = vpop.permute.xlu0 %1590
    %v1593 = vadd.f32 %v1583, %v1591
    %v1594 = vtanh.pop %v1593
    %1596 = vrot.lane.b32.xlu0 %v1594, 32
    %v1597 = vpop.permute.xlu0 %1596
    %v1599 = vmul.f32 %v1581, %v1597
    %v1600 = vpack.c.bf16 %v783, %v783
    %1602 = vrot.lane.b32.xlu0 %v1600, 64
    %v1603 = vpop.permute.xlu0 %1602
    %v1605 = vsel %vm211, %v1603, 0
    %1607 = vmatprep.subr.bf16.mxu0 0
    %1608 = vmatpush1.bf16.msra.mxu0 %v807
    %1609 = vmatprep.subr.bf16.mxu0 0
    %1610 = vmatpush1.bf16.msra.mxu0 %v808
    %1611 = vmatprep.subr.bf16.mxu0 0
    %1612 = vmatpush1.bf16.msra.mxu0 0
    %1613 = vmatprep.subr.bf16.mxu0 0
    %1614 = vmatpush1.bf16.msra.mxu0 0
    %1615 = vmatprep.subr.bf16.mxu0 0
    %1616 = vmatpush1.bf16.msra.mxu0 0
    %1617 = vmatprep.subr.bf16.mxu0 0
    %1618 = vmatpush1.bf16.msra.mxu0 0
    %1619 = vmatprep.subr.bf16.mxu0 0
    %1620 = vmatpush1.bf16.msra.mxu0 0
    %1621 = vmatprep.subr.bf16.mxu0 0
    %1622 = vmatpush1.bf16.msra.mxu0 0
    %1623 = vmatprep.subr.bf16.mxu0 0
    %1624 = vmatpush1.bf16.msra.mxu0 0
    %1625 = vmatprep.subr.bf16.mxu0 0
    %1626 = vmatpush1.bf16.msra.mxu0 0
    %1627 = vmatprep.subr.bf16.mxu0 0
    %1628 = vmatpush1.bf16.msra.mxu0 0
    %1629 = vmatprep.subr.bf16.mxu0 0
    %1630 = vmatpush1.bf16.msra.mxu0 0
    %1631 = vmatprep.subr.bf16.mxu0 0
    %1632 = vmatpush1.bf16.msra.mxu0 0
    %1633 = vmatprep.subr.bf16.mxu0 0
    %1634 = vmatpush1.bf16.msra.mxu0 0
    %1635 = vmatprep.subr.bf16.mxu0 0
    %1636 = vmatpush1.bf16.msra.mxu0 0
    %1637 = vmatprep.subr.bf16.mxu0 0
    %1638 = vmatpush1.bf16.msra.mxu0 0
    %1639 = vmatprep.mubr.bf16.mxu0 0
    %1640 = vmatmul.mubr.bf16.gmra.mrb[0].mxu0 %v1605
    %v1641 = vpop.f32.mrb[0].mxu0
    %v1642 = vadd.f32 %v797, %v1641
    %v1643 = vpop.f32.mrb[0].mxu0
    %v1644 = vpop.f32.mrb[0].mxu0
    %v1645 = vpop.f32.mrb[0].mxu0
    %1646 = vdwg.mxu0
    %v1647 = vpack.c.bf16 %v1599, %v1599
    %1649 = vrot.lane.b32.xlu0 %v1647, 64
    %v1650 = vpop.permute.xlu0 %1649
    %v1652 = vsel %vm211, %v1650, 0
    %1654 = vmatprep.subr.bf16.mxu0 0
    %1655 = vmatpush1.bf16.msra.mxu0 %v859
    %1656 = vmatprep.subr.bf16.mxu0 0
    %1657 = vmatpush1.bf16.msra.mxu0 %v860
    %1658 = vmatprep.subr.bf16.mxu0 0
    %1659 = vmatpush1.bf16.msra.mxu0 0
    %1660 = vmatprep.subr.bf16.mxu0 0
    %1661 = vmatpush1.bf16.msra.mxu0 0
    %1662 = vmatprep.subr.bf16.mxu0 0
    %1663 = vmatpush1.bf16.msra.mxu0 0
    %1664 = vmatprep.subr.bf16.mxu0 0
    %1665 = vmatpush1.bf16.msra.mxu0 0
    %1666 = vmatprep.subr.bf16.mxu0 0
    %1667 = vmatpush1.bf16.msra.mxu0 0
    %1668 = vmatprep.subr.bf16.mxu0 0
    %1669 = vmatpush1.bf16.msra.mxu0 0
    %1670 = vmatprep.subr.bf16.mxu0 0
    %1671 = vmatpush1.bf16.msra.mxu0 0
    %1672 = vmatprep.subr.bf16.mxu0 0
    %1673 = vmatpush1.bf16.msra.mxu0 0
    %1674 = vmatprep.subr.bf16.mxu0 0
    %1675 = vmatpush1.bf16.msra.mxu0 0
    %1676 = vmatprep.subr.bf16.mxu0 0
    %1677 = vmatpush1.bf16.msra.mxu0 0
    %1678 = vmatprep.subr.bf16.mxu0 0
    %1679 = vmatpush1.bf16.msra.mxu0 0
    %1680 = vmatprep.subr.bf16.mxu0 0
    %1681 = vmatpush1.bf16.msra.mxu0 0
    %1682 = vmatprep.subr.bf16.mxu0 0
    %1683 = vmatpush1.bf16.msra.mxu0 0
    %1684 = vmatprep.subr.bf16.mxu0 0
    %1685 = vmatpush1.bf16.msra.mxu0 0
    %1686 = vmatprep.mubr.bf16.mxu0 0
    %1687 = vmatmul.mubr.bf16.gmra.mrb[0].mxu0 %v1652
    %v1688 = vpop.f32.mrb[0].mxu0
    %v1689 = vadd.f32 0.0, %v1688
    %v1690 = vpop.f32.mrb[0].mxu0
    %v1691 = vpop.f32.mrb[0].mxu0
    %v1692 = vpop.f32.mrb[0].mxu0
    %1693 = vdwg.mxu0
    %v1694 = vadd.f32 %v1642, %v1689
    %v1695 = vxor.u32 %v1694, 2147483648
    %v1696 = vmul.f32 %v1695, 1.442695
    %v1697 = vpow.pop %v1696
    %v1698 = vadd.f32 %v1697, 1.0
    %v1699 = vrcp.pop %v1698
    %v1700 = vmul.f32 1.0, %v1699
    %v1701 = vtanh.pop %v1694
    %v1702 = vmul.f32 %v1700, %v1593
    %1704 = vrot.lane.b32.xlu0 %v1701, 32
    %v1705 = vpop.permute.xlu0 %1704
    %v1707 = vmul.f32 %v1700, %v1705
    %1709 = vrot.lane.b32.xlu0 %v1707, 32
    %v1710 = vpop.permute.xlu0 %1709
    %v1712 = vadd.f32 %v1702, %v1710
    %v1713 = vtanh.pop %v1712
    %1715 = vrot.lane.b32.xlu0 %v1713, 32
    %v1716 = vpop.permute.xlu0 %1715
    %v1718 = vmul.f32 %v1700, %v1716
    %1727 = vrot.lane.b32.xlu0 %v927, 64
    %v1728 = vpop.permute.xlu0 %1727
    %1729 = vrot.lane.b32.xlu0 %v1039, 64
    %v1730 = vpop.permute.xlu0 %1729
    %1731 = vrot.lane.b32.xlu0 %v1151, 64
    %v1732 = vpop.permute.xlu0 %1731
    %1733 = vrot.lane.b32.xlu0 %v1263, 64
    %v1734 = vpop.permute.xlu0 %1733
    %1735 = vrot.lane.b32.xlu0 %v1375, 64
    %v1736 = vpop.permute.xlu0 %1735
    %1737 = vrot.lane.b32.xlu0 %v1487, 64
    %v1738 = vpop.permute.xlu0 %1737
    %1739 = vrot.lane.b32.xlu0 %v1599, 64
    %v1740 = vpop.permute.xlu0 %1739
    %1741 = vrot.lane.b32.xlu0 %v1718, 64
    %v1742 = vpop.permute.xlu0 %1741
    %vm1751 = vcmask 254976
    %1752 = vst.msk [vmem:[%s7] sm:$0x3] %vm1751, %v1728
    %1753 = vst.msk [vmem:[%s7 + $0x2] sm:$0x3] %vm1751, %v1730
    %1754 = vst.msk [vmem:[%s7 + $0x4] sm:$0x3] %vm1751, %v1732
    %1755 = vst.msk [vmem:[%s7 + $0x6] sm:$0x3] %vm1751, %v1734
    %1756 = vst.msk [vmem:[%s7 + $0x8] sm:$0x3] %vm1751, %v1736
    %1757 = vst.msk [vmem:[%s7 + $0xa] sm:$0x3] %vm1751, %v1738
    %1758 = vst.msk [vmem:[%s7 + $0xc] sm:$0x3] %vm1751, %v1740
    %1759 = vst.msk [vmem:[%s7 + $0xe] sm:$0x3] %vm1751, %v1742
    // Predicated region
    $region34: #{ftlstm_forward.1} parent=1 // pred_check
      _
    $region35: #{ftlstm_forward.1} parent=1 // pred_check_branch
      %1761 = sbr.rel (0) target = $region37
    $region36: #{ftlstm_forward.1} parent=1 // pred_region
      _
    $region37: #{ftlstm_forward.1} parent=1 // pred_fallthru
      _
    // Predicated region
    $region38: #{ftlstm_forward.1} parent=1 // pred_check
      _
    $region39: #{ftlstm_forward.1} parent=1 // pred_check_branch
      %1763 = sbr.rel (0) target = $region41
    $region40: #{ftlstm_forward.1} parent=1 // pred_region
      _
    $region41: #{ftlstm_forward.1} parent=1 // pred_fallthru
      _
    %1764 = vsyncpa [#allocation3], 1

</llo_original>
